<compile_context>
chip_gen: v5e
topology: v5e:2x2
jax: 0.10.0
libtpu: 0.0.40
codegen_flags: <defaults>
</compile_context>

<pallas_src>
import functools

import jax
import jax.numpy as jnp
from jax import lax
from jax.experimental import pallas as pl
from jax.experimental.pallas import tpu as pltpu

_LANE = 128
_SUBLANE = 8


def _pad_to(n, m):
    return -(-n // m) * m


def _sigmoid(x):
    # Single-EUP-op logistic: sigmoid(x) = 0.5 * tanh(0.5 * x) + 0.5
    return 0.5 * jnp.tanh(0.5 * x) + 0.5


def _vmem_capacity_bytes():
    try:
        info = pltpu.get_tpu_info()
        for name in ("vmem_capacity_bytes", "vmem_size_bytes"):
            v = getattr(info, name, None)
            if v:
                return int(v)
    except Exception:
        pass
    return 64 << 20                      # conservative: v7x per-TC physical VMEM


def _tile_bytes(rows, cols, itemsize):
    return _pad_to(max(rows, 1), _SUBLANE) * _pad_to(max(cols, 1), _LANE) * itemsize


def _vmem_bytes(block_t, Bp, I, Hp, isz_c):
    """VMEM estimate: 2 buffers per pipelined in/out spec + resident scratch."""
    b = 0
    b += 2 * _tile_bytes(block_t * Bp, I, isz_c)      # streamed x block
    b += 2 * _tile_bytes(I, 4 * Hp, isz_c)            # W_ih (still double-buffered)
    b += 2 * _tile_bytes(Hp, 4 * Hp, isz_c)           # W_hh
    b += 2 * _tile_bytes(1, 4 * Hp, 4)                # fused LSTM bias (f32)
    b += 2 * _tile_bytes(Hp, _LANE, 4)                # linear head weight (f32)
    b += 2 * _tile_bytes(1, _LANE, 4)                 # linear head bias (f32)
    b += 2 * _tile_bytes(Bp, _LANE, 4)                # output slab
    b += _tile_bytes(Bp, Hp, isz_c)                   # h scratch (compute dtype)
    b += _tile_bytes(Bp, Hp, 4)                       # c scratch (f32)
    b += _tile_bytes(block_t * Bp, 4 * Hp, isz_c)     # x-projection scratch
    return b


def _lstm_head_kernel(x_ref, wih_ref, whh_ref, b_ref, wl_ref, bl_ref, out_ref,
                      h_sc, c_sc, xp_sc, *,
                      hidden_p, batch_p, block_t, chunk_t, num_blocks,
                      tail_steps, unroll):
    """One time block of the LSTM recurrence + (on the last block) the head.

    Gate order follows PyTorch (i, f, g, o); each gate occupies a lane-aligned
    hidden_p-wide slice of the 4*hidden_p gate vector.
    """
    Hp, Bp = hidden_p, batch_p
    chunk_rows = chunk_t * Bp
    tb = pl.program_id(0)

    @pl.when(tb == 0)
    def _init():
        h_sc[...] = jnp.zeros_like(h_sc)
        c_sc[...] = jnp.zeros_like(c_sc)

    def project_static(row0):
        # Project one whole chunk (chunk_t timesteps) with a single MXU matmul.
        xp = jnp.dot(x_ref[row0:row0 + chunk_rows, :], wih_ref[...],
                     preferred_element_type=jnp.float32) + b_ref[...]
        xp_sc[row0:row0 + chunk_rows, :] = xp.astype(xp_sc.dtype)

    def lstm_steps(n_steps, base, proj_base):
        # n_steps / base / proj_base are static Python ints (proj_base may be None).
        def step(t, carry):
            r = pl.multiple_of(base + t * Bp, Bp)
            x_proj = xp_sc[pl.ds(r, Bp), :].astype(jnp.float32)
            gates = x_proj + jnp.dot(h_sc[...], whh_ref[...],
                                     preferred_element_type=jnp.float32)
            if proj_base is not None:
                # Interleave: project one future timestep (next chunk) per step
                # so its MXU work hides under this step's EUP/VPU gate math.
                pr = pl.multiple_of(proj_base + t * Bp, Bp)
                nxt = jnp.dot(x_ref[pl.ds(pr, Bp), :], wih_ref[...],
                              preferred_element_type=jnp.float32) + b_ref[...]
                xp_sc[pl.ds(pr, Bp), :] = nxt.astype(xp_sc.dtype)
            i_g = _sigmoid(gates[:, 0 * Hp:1 * Hp])
            f_g = _sigmoid(gates[:, 1 * Hp:2 * Hp])
            g_g = jnp.tanh(gates[:, 2 * Hp:3 * Hp])
            o_g = _sigmoid(gates[:, 3 * Hp:4 * Hp])
            c_new = f_g * c_sc[...] + i_g * g_g
            c_sc[...] = c_new
            h_sc[...] = (o_g * jnp.tanh(c_new)).astype(h_sc.dtype)
            return carry

        lax.fori_loop(0, n_steps, step, 0, unroll=unroll)

    def run_block(n_valid):
        n_chunks = -(-n_valid // chunk_t)
        project_static(0)                          # prologue: chunk 0 projection
        for c in range(n_chunks):
            n_steps = min(chunk_t, n_valid - c * chunk_t)
            proj_base = (c + 1) * chunk_rows if (c + 1) < n_chunks else None
            lstm_steps(n_steps, c * chunk_rows, proj_base)

    # Per-step seq_len guards removed: only the (static) tail block differs.
    if num_blocks == 1:
        run_block(tail_steps)
    elif tail_steps == block_t:
        run_block(block_t)
    else:
        @pl.when(tb < num_blocks - 1)
        def _full_blocks():
            run_block(block_t)

        @pl.when(tb == num_blocks - 1)
        def _tail_block():
            run_block(tail_steps)

    def finalize():
        h_f32 = h_sc[...].astype(jnp.float32)
        out_ref[...] = (jnp.dot(h_f32, wl_ref[...],
                                preferred_element_type=jnp.float32)
                        + bl_ref[...])

    if num_blocks == 1:
        finalize()
    else:
        @pl.when(tb == num_blocks - 1)
        def _fin():
            finalize()


def lstm_model_forward(x, params, *, block_t=None, compute_dtype=jnp.bfloat16):
    """x: (B, T, I) float32 (batch_first, like the PyTorch module). Returns (B, 1) f32."""
    B, T, I = x.shape
    H = params["weight_hh"].shape[1]               # weight_hh: (4H, H)
    isz_c = jnp.dtype(compute_dtype).itemsize

    Hp = _pad_to(H, _LANE)                         # lane-aligned hidden per gate
    sub = _SUBLANE * max(1, 4 // isz_c)            # 8 rows for f32, 16 for bf16:
    Bp = _pad_to(B, sub)                           # keeps dyn. row offsets tile-aligned

    chunk_t = 16
    cap = 128
    capacity = _vmem_capacity_bytes()
    if block_t is None:
        budget = (7 * capacity) // 10              # per-generation VMEM budget
        bt = cap
        while bt > chunk_t and _vmem_bytes(bt, Bp, I, Hp, isz_c) > budget:
            bt -= chunk_t
        block_t = max(chunk_t, bt)
    block_t = max(1, min(int(block_t), cap))
    if T <= block_t:
        block_t = T
    chunk_t = min(chunk_t, block_t)
    block_t = _pad_to(block_t, chunk_t)            # whole number of chunks / block
    nt = -(-T // block_t)
    Tp = nt * block_t
    tail = T - (nt - 1) * block_t
    unroll = True if chunk_t <= 8 else 8

    # ---- host-side layout prep (time-major 2-D, gate-aligned, zero-padded) ----
    x_tm = jnp.transpose(x, (1, 0, 2))                                 # (T, B, I)
    x_tm = jnp.pad(x_tm, ((0, Tp - T), (0, Bp - B), (0, 0)))           # (Tp, Bp, I)
    x2d = x_tm.reshape(Tp * Bp, I).astype(compute_dtype)               # (Tp*Bp, I)

    def pad_gate_cols(w_t):
        # w_t: (rows, 4H) with columns grouped [i|f|g|o]; pad each gate to Hp.
        parts = [jnp.pad(w_t[:, g * H:(g + 1) * H], ((0, 0), (0, Hp - H)))
                 for g in range(4)]
        return jnp.concatenate(parts, axis=1)                          # (rows, 4Hp)

    w_ih_t = pad_gate_cols(params["weight_ih"].T.astype(jnp.float32))
    w_ih_t = w_ih_t.astype(compute_dtype)                              # (I, 4Hp)
    w_hh_t = pad_gate_cols(params["weight_hh"].T.astype(jnp.float32))
    w_hh_t = jnp.pad(w_hh_t, ((0, Hp - H), (0, 0))).astype(compute_dtype)  # (Hp, 4Hp)
    bias = (params["bias_ih"] + params["bias_hh"]).astype(jnp.float32)
    bias = pad_gate_cols(bias.reshape(1, 4 * H))                       # (1, 4Hp) f32

    w_l = params["linear_weight"].astype(jnp.float32)                  # (1, H)
    w_l_pad = jnp.zeros((Hp, _LANE), jnp.float32).at[:H, 0].set(w_l[0])
    b_l_pad = jnp.zeros((1, _LANE), jnp.float32).at[0, 0].set(
        params["linear_bias"].astype(jnp.float32)[0])

    # ---- VMEM limit: accurate accounting + headroom, capped per generation ----
    need = _vmem_bytes(block_t, Bp, I, Hp, isz_c)
    hard_cap = capacity - max(8 << 20, capacity // 8)   # ~112 MiB v5e/v6e, ~56 MiB v7x
    vmem_limit = int(min(max(need + (4 << 20), 16 << 20), hard_cap))

    res = lambda t: (0, 0)   # weight/bias/output tiles stay resident across the grid
    kernel = functools.partial(
        _lstm_head_kernel, hidden_p=Hp, batch_p=Bp, block_t=block_t,
        chunk_t=chunk_t, num_blocks=nt, tail_steps=tail, unroll=unroll)

    out = pl.pallas_call(
        kernel,
        out_shape=jax.ShapeDtypeStruct((Bp, _LANE), jnp.float32),
        grid_spec=pltpu.PrefetchScalarGridSpec(
            num_scalar_prefetch=0,
            grid=(nt,),
            in_specs=[
                pl.BlockSpec((block_t * Bp, I), lambda t: (t, 0)),   # streamed x
                pl.BlockSpec(w_ih_t.shape, res),
                pl.BlockSpec(w_hh_t.shape, res),
                pl.BlockSpec(bias.shape, res),
                pl.BlockSpec(w_l_pad.shape, res),
                pl.BlockSpec(b_l_pad.shape, res),
            ],
            out_specs=pl.BlockSpec((Bp, _LANE), res),
            scratch_shapes=[
                pltpu.VMEM((Bp, Hp), compute_dtype),                 # h state
                pltpu.VMEM((Bp, Hp), jnp.float32),                   # c state (f32)
                pltpu.VMEM((block_t * Bp, 4 * Hp), compute_dtype),   # x projection
            ]),
        compiler_params=pltpu.CompilerParams(
            dimension_semantics=("arbitrary",),
            vmem_limit_bytes=vmem_limit),
    )(x2d, w_ih_t, w_hh_t, bias, w_l_pad, b_l_pad)

    return out[:B, :1]


def init_params(key, input_size, hidden_size):
    """Deterministic PyTorch-shaped parameters (uniform +/- 1/sqrt(H))."""
    H = hidden_size
    k = 1.0 / jnp.sqrt(jnp.float32(H))
    keys = jax.random.split(key, 6)
    u = lambda kk, shape: jax.random.uniform(kk, shape, jnp.float32, -k, k)
    return {
        "weight_ih": u(keys[0], (4 * H, input_size)),
        "weight_hh": u(keys[1], (4 * H, H)),
        "bias_ih": u(keys[2], (4 * H,)),
        "bias_hh": u(keys[3], (4 * H,)),
        "linear_weight": u(keys[4], (1, H)),
        "linear_bias": u(keys[5], (1,)),
    }


def reference_forward(x, params):
    """Pure-JAX reference matching torch.nn.LSTM(batch_first=True) + Linear."""
    B, T, I = x.shape
    H = params["weight_hh"].shape[1]
    w_ih_t = params["weight_ih"].T
    w_hh_t = params["weight_hh"].T
    bias = params["bias_ih"] + params["bias_hh"]
    h = jnp.zeros((B, H), jnp.float32)
    c = jnp.zeros((B, H), jnp.float32)

    def step(carry, x_t):
        h, c = carry
        g = x_t @ w_ih_t + h @ w_hh_t + bias
        i_g = jax.nn.sigmoid(g[:, 0 * H:1 * H])
        f_g = jax.nn.sigmoid(g[:, 1 * H:2 * H])
        g_g = jnp.tanh(g[:, 2 * H:3 * H])
        o_g = jax.nn.sigmoid(g[:, 3 * H:4 * H])
        c = f_g * c + i_g * g_g
        h = o_g * jnp.tanh(c)
        return (h, c), None

    (h, _), _ = lax.scan(step, (h, c), jnp.transpose(x, (1, 0, 2)))
    return h @ params["linear_weight"].T + params["linear_bias"]


if __name__ == "__main__":
    B, T, I, H = 2, 8, 4, 32
    key = jax.random.PRNGKey(0)
    kx, kp = jax.random.split(key)
    x = jax.random.normal(kx, (B, T, I), jnp.float32)
    params = init_params(kp, input_size=I, hidden_size=H)

    ref = reference_forward(x, params)

    # f32 compute path: near-exact check against the pure-JAX reference.
    out_f32 = jax.block_until_ready(
        lstm_model_forward(x, params, compute_dtype=jnp.float32))
    assert out_f32.shape == (B, 1), out_f32.shape
    assert jnp.allclose(out_f32, ref, atol=1e-4, rtol=1e-4), (out_f32, ref)

    # Default production path (bf16 MXU operands): tolerance-based check.
    out_bf16 = jax.block_until_ready(lstm_model_forward(x, params))
    assert out_bf16.shape == (B, 1), out_bf16.shape
    assert jnp.allclose(out_bf16, ref, atol=1e-1, rtol=1e-1), (out_bf16, ref)

    print("KERNEL_OK")
</pallas_src>

<mosaic_0001>
module attributes {stable_mosaic.version = 11 : i64} {
  func.func @_lstm_head_kernel(%arg0: i32, %arg1: memref<64x4xf32, #tpu.memory_space<vmem>>, %arg2: memref<4x512xf32, #tpu.memory_space<vmem>>, %arg3: memref<128x512xf32, #tpu.memory_space<vmem>>, %arg4: memref<1x512xf32, #tpu.memory_space<vmem>>, %arg5: memref<128x128xf32, #tpu.memory_space<vmem>>, %arg6: memref<1x128xf32, #tpu.memory_space<vmem>>, %arg7: memref<8x128xf32, #tpu.memory_space<vmem>>, %arg8: memref<8x128xf32, #tpu.memory_space<vmem>>, %arg9: memref<8x128xf32, #tpu.memory_space<vmem>>, %arg10: memref<64x512xf32, #tpu.memory_space<vmem>>) attributes {dimension_semantics = [#tpu.dimension_semantics<arbitrary>], iteration_bounds = array<i64: 1>, scalar_prefetch = 0 : i64, scratch_operands = 3 : i64, tpu.core_type = #tpu.core_type<tc>, window_params = [{transform_indices = @transform_0, window_bounds = array<i64: 64, 4>}, {pipeline_mode = #tpu.pipeline_mode<synchronous>, transform_indices = @transform_1, window_bounds = array<i64: 4, 512>}, {pipeline_mode = #tpu.pipeline_mode<synchronous>, transform_indices = @transform_2, window_bounds = array<i64: 128, 512>}, {pipeline_mode = #tpu.pipeline_mode<synchronous>, transform_indices = @transform_3, window_bounds = array<i64: 1, 512>}, {pipeline_mode = #tpu.pipeline_mode<synchronous>, transform_indices = @transform_4, window_bounds = array<i64: 128, 128>}, {pipeline_mode = #tpu.pipeline_mode<synchronous>, transform_indices = @transform_5, window_bounds = array<i64: 1, 128>}, {pipeline_mode = #tpu.pipeline_mode<synchronous>, transform_indices = @transform_6, window_bounds = array<i64: 8, 128>}]} {
    %c0_i32 = arith.constant 0 : i32
    %0 = arith.cmpi eq, %arg0, %c0_i32 : i32
    %1 = arith.extui %0 : i1 to i32
    %c0_i32_0 = arith.constant 0 : i32
    %2 = arith.cmpi ne, %1, %c0_i32_0 : i32
    scf.if %2 {
      %cst_202 = arith.constant 0.000000e+00 : f32
      %361 = vector.broadcast %cst_202 : f32 to vector<8x128xf32>
      %c0_203 = arith.constant 0 : index
      %c0_204 = arith.constant 0 : index
      %362 = vector.load %arg8[%c0_203, %c0_204] : memref<8x128xf32, #tpu.memory_space<vmem>>, vector<8x128xf32>
      tpu.vector_store %arg8[%c0_203, %c0_204], %361 {strides = array<i32>} : memref<8x128xf32, #tpu.memory_space<vmem>>, vector<8x128xf32>,
      %cst_205 = arith.constant 0.000000e+00 : f32
      %363 = vector.broadcast %cst_205 : f32 to vector<8x128xf32>
      %c0_206 = arith.constant 0 : index
      %c0_207 = arith.constant 0 : index
      %364 = vector.load %arg9[%c0_206, %c0_207] : memref<8x128xf32, #tpu.memory_space<vmem>>, vector<8x128xf32>
      tpu.vector_store %arg9[%c0_206, %c0_207], %363 {strides = array<i32>} : memref<8x128xf32, #tpu.memory_space<vmem>>, vector<8x128xf32>,
    } else {
    }
    %c0 = arith.constant 0 : index
    %c0_1 = arith.constant 0 : index
    %3 = vector.load %arg1[%c0, %c0_1] : memref<64x4xf32, #tpu.memory_space<vmem>>, vector<64x4xf32>
    %c0_2 = arith.constant 0 : index
    %c0_3 = arith.constant 0 : index
    %4 = vector.load %arg2[%c0_2, %c0_3] : memref<4x512xf32, #tpu.memory_space<vmem>>, vector<4x512xf32>
    %cst = arith.constant dense<0.000000e+00> : vector<64x512xf32>
    %5 = tpu.matmul %3, %4, %cst {dimension_numbers = #tpu.dot_dimension_numbers<[1], [0], [0], [1], [0, 0, 1, 1], [], []>} : vector<64x4xf32>, vector<4x512xf32>, vector<64x512xf32> -> vector<64x512xf32>
    %c0_4 = arith.constant 0 : index
    %c0_5 = arith.constant 0 : index
    %6 = vector.load %arg4[%c0_4, %c0_5] : memref<1x512xf32, #tpu.memory_space<vmem>>, vector<1x512xf32>
    %7 = vector.broadcast %6 : vector<1x512xf32> to vector<64x512xf32>
    %8 = arith.addf %5, %7 : vector<64x512xf32>
    %c0_6 = arith.constant 0 : index
    %c0_7 = arith.constant 0 : index
    %9 = vector.load %arg10[%c0_6, %c0_7] : memref<64x512xf32, #tpu.memory_space<vmem>>, vector<64x512xf32>
    tpu.vector_store %arg10[%c0_6, %c0_7], %8 {strides = array<i32>} : memref<64x512xf32, #tpu.memory_space<vmem>>, vector<64x512xf32>,
    %c0_i32_8 = arith.constant 0 : i32
    %c8_i32 = arith.constant 8 : i32
    %10 = arith.muli %c0_i32_8, %c8_i32 : i32
    %c0_i32_9 = arith.constant 0 : i32
    %11 = arith.addi %c0_i32_9, %10 : i32
    %12 = tpu.assume_multiple %11, 8 : i32
    %13 = arith.index_cast %12 : i32 to index
    %c0_10 = arith.constant 0 : index
    %14 = vector.load %arg10[%13, %c0_10] : memref<64x512xf32, #tpu.memory_space<vmem>>, vector<8x512xf32>
    %c0_11 = arith.constant 0 : index
    %c0_12 = arith.constant 0 : index
    %15 = vector.load %arg8[%c0_11, %c0_12] : memref<8x128xf32, #tpu.memory_space<vmem>>, vector<8x128xf32>
    %c0_13 = arith.constant 0 : index
    %c0_14 = arith.constant 0 : index
    %16 = vector.load %arg3[%c0_13, %c0_14] : memref<128x512xf32, #tpu.memory_space<vmem>>, vector<128x512xf32>
    %cst_15 = arith.constant dense<0.000000e+00> : vector<8x512xf32>
    %17 = tpu.matmul %15, %16, %cst_15 {dimension_numbers = #tpu.dot_dimension_numbers<[1], [0], [0], [1], [0, 0, 1, 1], [], []>} : vector<8x128xf32>, vector<128x512xf32>, vector<8x512xf32> -> vector<8x512xf32>
    %18 = arith.addf %14, %17 : vector<8x512xf32>
    %19 = vector.extract_strided_slice %18 {offsets = [0, 0], sizes = [8, 128], strides = [1, 1]} : vector<8x512xf32> to vector<8x128xf32>
    %cst_16 = arith.constant 5.000000e-01 : f32
    %20 = vector.broadcast %cst_16 : f32 to vector<8x128xf32>
    %21 = arith.mulf %20, %19 : vector<8x128xf32>
    %22 = math.tanh %21 : vector<8x128xf32>
    %cst_17 = arith.constant 5.000000e-01 : f32
    %23 = vector.broadcast %cst_17 : f32 to vector<8x128xf32>
    %24 = arith.mulf %23, %22 : vector<8x128xf32>
    %cst_18 = arith.constant 5.000000e-01 : f32
    %25 = vector.broadcast %cst_18 : f32 to vector<8x128xf32>
    %26 = arith.addf %24, %25 : vector<8x128xf32>
    %27 = vector.extract_strided_slice %18 {offsets = [0, 128], sizes = [8, 128], strides = [1, 1]} : vector<8x512xf32> to vector<8x128xf32>
    %cst_19 = arith.constant 5.000000e-01 : f32
    %28 = vector.broadcast %cst_19 : f32 to vector<8x128xf32>
    %29 = arith.mulf %28, %27 : vector<8x128xf32>
    %30 = math.tanh %29 : vector<8x128xf32>
    %cst_20 = arith.constant 5.000000e-01 : f32
    %31 = vector.broadcast %cst_20 : f32 to vector<8x128xf32>
    %32 = arith.mulf %31, %30 : vector<8x128xf32>
    %cst_21 = arith.constant 5.000000e-01 : f32
    %33 = vector.broadcast %cst_21 : f32 to vector<8x128xf32>
    %34 = arith.addf %32, %33 : vector<8x128xf32>
    %35 = vector.extract_strided_slice %18 {offsets = [0, 256], sizes = [8, 128], strides = [1, 1]} : vector<8x512xf32> to vector<8x128xf32>
    %36 = math.tanh %35 : vector<8x128xf32>
    %37 = vector.extract_strided_slice %18 {offsets = [0, 384], sizes = [8, 128], strides = [1, 1]} : vector<8x512xf32> to vector<8x128xf32>
    %cst_22 = arith.constant 5.000000e-01 : f32
    %38 = vector.broadcast %cst_22 : f32 to vector<8x128xf32>
    %39 = arith.mulf %38, %37 : vector<8x128xf32>
    %40 = math.tanh %39 : vector<8x128xf32>
    %cst_23 = arith.constant 5.000000e-01 : f32
    %41 = vector.broadcast %cst_23 : f32 to vector<8x128xf32>
    %42 = arith.mulf %41, %40 : vector<8x128xf32>
    %cst_24 = arith.constant 5.000000e-01 : f32
    %43 = vector.broadcast %cst_24 : f32 to vector<8x128xf32>
    %44 = arith.addf %42, %43 : vector<8x128xf32>
    %c0_25 = arith.constant 0 : index
    %c0_26 = arith.constant 0 : index
    %45 = vector.load %arg9[%c0_25, %c0_26] : memref<8x128xf32, #tpu.memory_space<vmem>>, vector<8x128xf32>
    %46 = arith.mulf %34, %45 : vector<8x128xf32>
    %47 = arith.mulf %26, %36 : vector<8x128xf32>
    %48 = arith.addf %46, %47 : vector<8x128xf32>
    %c0_27 = arith.constant 0 : index
    %c0_28 = arith.constant 0 : index
    %49 = vector.load %arg9[%c0_27, %c0_28] : memref<8x128xf32, #tpu.memory_space<vmem>>, vector<8x128xf32>
    tpu.vector_store %arg9[%c0_27, %c0_28], %48 {strides = array<i32>} : memref<8x128xf32, #tpu.memory_space<vmem>>, vector<8x128xf32>,
    %50 = math.tanh %48 : vector<8x128xf32>
    %51 = arith.mulf %44, %50 : vector<8x128xf32>
    %c0_29 = arith.constant 0 : index
    %c0_30 = arith.constant 0 : index
    %52 = vector.load %arg8[%c0_29, %c0_30] : memref<8x128xf32, #tpu.memory_space<vmem>>, vector<8x128xf32>
    tpu.vector_store %arg8[%c0_29, %c0_30], %51 {strides = array<i32>} : memref<8x128xf32, #tpu.memory_space<vmem>>, vector<8x128xf32>,
    %c1_i32 = arith.constant 1 : i32
    %c8_i32_31 = arith.constant 8 : i32
    %53 = arith.muli %c1_i32, %c8_i32_31 : i32
    %c0_i32_32 = arith.constant 0 : i32
    %54 = arith.addi %c0_i32_32, %53 : i32
    %55 = tpu.assume_multiple %54, 8 : i32
    %56 = arith.index_cast %55 : i32 to index
    %c0_33 = arith.constant 0 : index
    %57 = vector.load %arg10[%56, %c0_33] : memref<64x512xf32, #tpu.memory_space<vmem>>, vector<8x512xf32>
    %c0_34 = arith.constant 0 : index
    %c0_35 = arith.constant 0 : index
    %58 = vector.load %arg8[%c0_34, %c0_35] : memref<8x128xf32, #tpu.memory_space<vmem>>, vector<8x128xf32>
    %c0_36 = arith.constant 0 : index
    %c0_37 = arith.constant 0 : index
    %59 = vector.load %arg3[%c0_36, %c0_37] : memref<128x512xf32, #tpu.memory_space<vmem>>, vector<128x512xf32>
    %cst_38 = arith.constant dense<0.000000e+00> : vector<8x512xf32>
    %60 = tpu.matmul %58, %59, %cst_38 {dimension_numbers = #tpu.dot_dimension_numbers<[1], [0], [0], [1], [0, 0, 1, 1], [], []>} : vector<8x128xf32>, vector<128x512xf32>, vector<8x512xf32> -> vector<8x512xf32>
    %61 = arith.addf %57, %60 : vector<8x512xf32>
    %62 = vector.extract_strided_slice %61 {offsets = [0, 0], sizes = [8, 128], strides = [1, 1]} : vector<8x512xf32> to vector<8x128xf32>
    %cst_39 = arith.constant 5.000000e-01 : f32
    %63 = vector.broadcast %cst_39 : f32 to vector<8x128xf32>
    %64 = arith.mulf %63, %62 : vector<8x128xf32>
    %65 = math.tanh %64 : vector<8x128xf32>
    %cst_40 = arith.constant 5.000000e-01 : f32
    %66 = vector.broadcast %cst_40 : f32 to vector<8x128xf32>
    %67 = arith.mulf %66, %65 : vector<8x128xf32>
    %cst_41 = arith.constant 5.000000e-01 : f32
    %68 = vector.broadcast %cst_41 : f32 to vector<8x128xf32>
    %69 = arith.addf %67, %68 : vector<8x128xf32>
    %70 = vector.extract_strided_slice %61 {offsets = [0, 128], sizes = [8, 128], strides = [1, 1]} : vector<8x512xf32> to vector<8x128xf32>
    %cst_42 = arith.constant 5.000000e-01 : f32
    %71 = vector.broadcast %cst_42 : f32 to vector<8x128xf32>
    %72 = arith.mulf %71, %70 : vector<8x128xf32>
    %73 = math.tanh %72 : vector<8x128xf32>
    %cst_43 = arith.constant 5.000000e-01 : f32
    %74 = vector.broadcast %cst_43 : f32 to vector<8x128xf32>
    %75 = arith.mulf %74, %73 : vector<8x128xf32>
    %cst_44 = arith.constant 5.000000e-01 : f32
    %76 = vector.broadcast %cst_44 : f32 to vector<8x128xf32>
    %77 = arith.addf %75, %76 : vector<8x128xf32>
    %78 = vector.extract_strided_slice %61 {offsets = [0, 256], sizes = [8, 128], strides = [1, 1]} : vector<8x512xf32> to vector<8x128xf32>
    %79 = math.tanh %78 : vector<8x128xf32>
    %80 = vector.extract_strided_slice %61 {offsets = [0, 384], sizes = [8, 128], strides = [1, 1]} : vector<8x512xf32> to vector<8x128xf32>
    %cst_45 = arith.constant 5.000000e-01 : f32
    %81 = vector.broadcast %cst_45 : f32 to vector<8x128xf32>
    %82 = arith.mulf %81, %80 : vector<8x128xf32>
    %83 = math.tanh %82 : vector<8x128xf32>
    %cst_46 = arith.constant 5.000000e-01 : f32
    %84 = vector.broadcast %cst_46 : f32 to vector<8x128xf32>
    %85 = arith.mulf %84, %83 : vector<8x128xf32>
    %cst_47 = arith.constant 5.000000e-01 : f32
    %86 = vector.broadcast %cst_47 : f32 to vector<8x128xf32>
    %87 = arith.addf %85, %86 : vector<8x128xf32>
    %c0_48 = arith.constant 0 : index
    %c0_49 = arith.constant 0 : index
    %88 = vector.load %arg9[%c0_48, %c0_49] : memref<8x128xf32, #tpu.memory_space<vmem>>, vector<8x128xf32>
    %89 = arith.mulf %77, %88 : vector<8x128xf32>
    %90 = arith.mulf %69, %79 : vector<8x128xf32>
    %91 = arith.addf %89, %90 : vector<8x128xf32>
    %c0_50 = arith.constant 0 : index
    %c0_51 = arith.constant 0 : index
    %92 = vector.load %arg9[%c0_50, %c0_51] : memref<8x128xf32, #tpu.memory_space<vmem>>, vector<8x128xf32>
    tpu.vector_store %arg9[%c0_50, %c0_51], %91 {strides = array<i32>} : memref<8x128xf32, #tpu.memory_space<vmem>>, vector<8x128xf32>,
    %93 = math.tanh %91 : vector<8x128xf32>
    %94 = arith.mulf %87, %93 : vector<8x128xf32>
    %c0_52 = arith.constant 0 : index
    %c0_53 = arith.constant 0 : index
    %95 = vector.load %arg8[%c0_52, %c0_53] : memref<8x128xf32, #tpu.memory_space<vmem>>, vector<8x128xf32>
    tpu.vector_store %arg8[%c0_52, %c0_53], %94 {strides = array<i32>} : memref<8x128xf32, #tpu.memory_space<vmem>>, vector<8x128xf32>,
    %c2_i32 = arith.constant 2 : i32
    %c8_i32_54 = arith.constant 8 : i32
    %96 = arith.muli %c2_i32, %c8_i32_54 : i32
    %c0_i32_55 = arith.constant 0 : i32
    %97 = arith.addi %c0_i32_55, %96 : i32
    %98 = tpu.assume_multiple %97, 8 : i32
    %99 = arith.index_cast %98 : i32 to index
    %c0_56 = arith.constant 0 : index
    %100 = vector.load %arg10[%99, %c0_56] : memref<64x512xf32, #tpu.memory_space<vmem>>, vector<8x512xf32>
    %c0_57 = arith.constant 0 : index
    %c0_58 = arith.constant 0 : index
    %101 = vector.load %arg8[%c0_57, %c0_58] : memref<8x128xf32, #tpu.memory_space<vmem>>, vector<8x128xf32>
    %c0_59 = arith.constant 0 : index
    %c0_60 = arith.constant 0 : index
    %102 = vector.load %arg3[%c0_59, %c0_60] : memref<128x512xf32, #tpu.memory_space<vmem>>, vector<128x512xf32>
    %cst_61 = arith.constant dense<0.000000e+00> : vector<8x512xf32>
    %103 = tpu.matmul %101, %102, %cst_61 {dimension_numbers = #tpu.dot_dimension_numbers<[1], [0], [0], [1], [0, 0, 1, 1], [], []>} : vector<8x128xf32>, vector<128x512xf32>, vector<8x512xf32> -> vector<8x512xf32>
    %104 = arith.addf %100, %103 : vector<8x512xf32>
    %105 = vector.extract_strided_slice %104 {offsets = [0, 0], sizes = [8, 128], strides = [1, 1]} : vector<8x512xf32> to vector<8x128xf32>
    %cst_62 = arith.constant 5.000000e-01 : f32
    %106 = vector.broadcast %cst_62 : f32 to vector<8x128xf32>
    %107 = arith.mulf %106, %105 : vector<8x128xf32>
    %108 = math.tanh %107 : vector<8x128xf32>
    %cst_63 = arith.constant 5.000000e-01 : f32
    %109 = vector.broadcast %cst_63 : f32 to vector<8x128xf32>
    %110 = arith.mulf %109, %108 : vector<8x128xf32>
    %cst_64 = arith.constant 5.000000e-01 : f32
    %111 = vector.broadcast %cst_64 : f32 to vector<8x128xf32>
    %112 = arith.addf %110, %111 : vector<8x128xf32>
    %113 = vector.extract_strided_slice %104 {offsets = [0, 128], sizes = [8, 128], strides = [1, 1]} : vector<8x512xf32> to vector<8x128xf32>
    %cst_65 = arith.constant 5.000000e-01 : f32
    %114 = vector.broadcast %cst_65 : f32 to vector<8x128xf32>
    %115 = arith.mulf %114, %113 : vector<8x128xf32>
    %116 = math.tanh %115 : vector<8x128xf32>
    %cst_66 = arith.constant 5.000000e-01 : f32
    %117 = vector.broadcast %cst_66 : f32 to vector<8x128xf32>
    %118 = arith.mulf %117, %116 : vector<8x128xf32>
    %cst_67 = arith.constant 5.000000e-01 : f32
    %119 = vector.broadcast %cst_67 : f32 to vector<8x128xf32>
    %120 = arith.addf %118, %119 : vector<8x128xf32>
    %121 = vector.extract_strided_slice %104 {offsets = [0, 256], sizes = [8, 128], strides = [1, 1]} : vector<8x512xf32> to vector<8x128xf32>
    %122 = math.tanh %121 : vector<8x128xf32>
    %123 = vector.extract_strided_slice %104 {offsets = [0, 384], sizes = [8, 128], strides = [1, 1]} : vector<8x512xf32> to vector<8x128xf32>
    %cst_68 = arith.constant 5.000000e-01 : f32
    %124 = vector.broadcast %cst_68 : f32 to vector<8x128xf32>
    %125 = arith.mulf %124, %123 : vector<8x128xf32>
    %126 = math.tanh %125 : vector<8x128xf32>
    %cst_69 = arith.constant 5.000000e-01 : f32
    %127 = vector.broadcast %cst_69 : f32 to vector<8x128xf32>
    %128 = arith.mulf %127, %126 : vector<8x128xf32>
    %cst_70 = arith.constant 5.000000e-01 : f32
    %129 = vector.broadcast %cst_70 : f32 to vector<8x128xf32>
    %130 = arith.addf %128, %129 : vector<8x128xf32>
    %c0_71 = arith.constant 0 : index
    %c0_72 = arith.constant 0 : index
    %131 = vector.load %arg9[%c0_71, %c0_72] : memref<8x128xf32, #tpu.memory_space<vmem>>, vector<8x128xf32>
    %132 = arith.mulf %120, %131 : vector<8x128xf32>
    %133 = arith.mulf %112, %122 : vector<8x128xf32>
    %134 = arith.addf %132, %133 : vector<8x128xf32>
    %c0_73 = arith.constant 0 : index
    %c0_74 = arith.constant 0 : index
    %135 = vector.load %arg9[%c0_73, %c0_74] : memref<8x128xf32, #tpu.memory_space<vmem>>, vector<8x128xf32>
    tpu.vector_store %arg9[%c0_73, %c0_74], %134 {strides = array<i32>} : memref<8x128xf32, #tpu.memory_space<vmem>>, vector<8x128xf32>,
    %136 = math.tanh %134 : vector<8x128xf32>
    %137 = arith.mulf %130, %136 : vector<8x128xf32>
    %c0_75 = arith.constant 0 : index
    %c0_76 = arith.constant 0 : index
    %138 = vector.load %arg8[%c0_75, %c0_76] : memref<8x128xf32, #tpu.memory_space<vmem>>, vector<8x128xf32>
    tpu.vector_store %arg8[%c0_75, %c0_76], %137 {strides = array<i32>} : memref<8x128xf32, #tpu.memory_space<vmem>>, vector<8x128xf32>,
    %c3_i32 = arith.constant 3 : i32
    %c8_i32_77 = arith.constant 8 : i32
    %139 = arith.muli %c3_i32, %c8_i32_77 : i32
    %c0_i32_78 = arith.constant 0 : i32
    %140 = arith.addi %c0_i32_78, %139 : i32
    %141 = tpu.assume_multiple %140, 8 : i32
    %142 = arith.index_cast %141 : i32 to index
    %c0_79 = arith.constant 0 : index
    %143 = vector.load %arg10[%142, %c0_79] : memref<64x512xf32, #tpu.memory_space<vmem>>, vector<8x512xf32>
    %c0_80 = arith.constant 0 : index
    %c0_81 = arith.constant 0 : index
    %144 = vector.load %arg8[%c0_80, %c0_81] : memref<8x128xf32, #tpu.memory_space<vmem>>, vector<8x128xf32>
    %c0_82 = arith.constant 0 : index
    %c0_83 = arith.constant 0 : index
    %145 = vector.load %arg3[%c0_82, %c0_83] : memref<128x512xf32, #tpu.memory_space<vmem>>, vector<128x512xf32>
    %cst_84 = arith.constant dense<0.000000e+00> : vector<8x512xf32>
    %146 = tpu.matmul %144, %145, %cst_84 {dimension_numbers = #tpu.dot_dimension_numbers<[1], [0], [0], [1], [0, 0, 1, 1], [], []>} : vector<8x128xf32>, vector<128x512xf32>, vector<8x512xf32> -> vector<8x512xf32>
    %147 = arith.addf %143, %146 : vector<8x512xf32>
    %148 = vector.extract_strided_slice %147 {offsets = [0, 0], sizes = [8, 128], strides = [1, 1]} : vector<8x512xf32> to vector<8x128xf32>
    %cst_85 = arith.constant 5.000000e-01 : f32
    %149 = vector.broadcast %cst_85 : f32 to vector<8x128xf32>
    %150 = arith.mulf %149, %148 : vector<8x128xf32>
    %151 = math.tanh %150 : vector<8x128xf32>
    %cst_86 = arith.constant 5.000000e-01 : f32
    %152 = vector.broadcast %cst_86 : f32 to vector<8x128xf32>
    %153 = arith.mulf %152, %151 : vector<8x128xf32>
    %cst_87 = arith.constant 5.000000e-01 : f32
    %154 = vector.broadcast %cst_87 : f32 to vector<8x128xf32>
    %155 = arith.addf %153, %154 : vector<8x128xf32>
    %156 = vector.extract_strided_slice %147 {offsets = [0, 128], sizes = [8, 128], strides = [1, 1]} : vector<8x512xf32> to vector<8x128xf32>
    %cst_88 = arith.constant 5.000000e-01 : f32
    %157 = vector.broadcast %cst_88 : f32 to vector<8x128xf32>
    %158 = arith.mulf %157, %156 : vector<8x128xf32>
    %159 = math.tanh %158 : vector<8x128xf32>
    %cst_89 = arith.constant 5.000000e-01 : f32
    %160 = vector.broadcast %cst_89 : f32 to vector<8x128xf32>
    %161 = arith.mulf %160, %159 : vector<8x128xf32>
    %cst_90 = arith.constant 5.000000e-01 : f32
    %162 = vector.broadcast %cst_90 : f32 to vector<8x128xf32>
    %163 = arith.addf %161, %162 : vector<8x128xf32>
    %164 = vector.extract_strided_slice %147 {offsets = [0, 256], sizes = [8, 128], strides = [1, 1]} : vector<8x512xf32> to vector<8x128xf32>
    %165 = math.tanh %164 : vector<8x128xf32>
    %166 = vector.extract_strided_slice %147 {offsets = [0, 384], sizes = [8, 128], strides = [1, 1]} : vector<8x512xf32> to vector<8x128xf32>
    %cst_91 = arith.constant 5.000000e-01 : f32
    %167 = vector.broadcast %cst_91 : f32 to vector<8x128xf32>
    %168 = arith.mulf %167, %166 : vector<8x128xf32>
    %169 = math.tanh %168 : vector<8x128xf32>
    %cst_92 = arith.constant 5.000000e-01 : f32
    %170 = vector.broadcast %cst_92 : f32 to vector<8x128xf32>
    %171 = arith.mulf %170, %169 : vector<8x128xf32>
    %cst_93 = arith.constant 5.000000e-01 : f32
    %172 = vector.broadcast %cst_93 : f32 to vector<8x128xf32>
    %173 = arith.addf %171, %172 : vector<8x128xf32>
    %c0_94 = arith.constant 0 : index
    %c0_95 = arith.constant 0 : index
    %174 = vector.load %arg9[%c0_94, %c0_95] : memref<8x128xf32, #tpu.memory_space<vmem>>, vector<8x128xf32>
    %175 = arith.mulf %163, %174 : vector<8x128xf32>
    %176 = arith.mulf %155, %165 : vector<8x128xf32>
    %177 = arith.addf %175, %176 : vector<8x128xf32>
    %c0_96 = arith.constant 0 : index
    %c0_97 = arith.constant 0 : index
    %178 = vector.load %arg9[%c0_96, %c0_97] : memref<8x128xf32, #tpu.memory_space<vmem>>, vector<8x128xf32>
    tpu.vector_store %arg9[%c0_96, %c0_97], %177 {strides = array<i32>} : memref<8x128xf32, #tpu.memory_space<vmem>>, vector<8x128xf32>,
    %179 = math.tanh %177 : vector<8x128xf32>
    %180 = arith.mulf %173, %179 : vector<8x128xf32>
    %c0_98 = arith.constant 0 : index
    %c0_99 = arith.constant 0 : index
    %181 = vector.load %arg8[%c0_98, %c0_99] : memref<8x128xf32, #tpu.memory_space<vmem>>, vector<8x128xf32>
    tpu.vector_store %arg8[%c0_98, %c0_99], %180 {strides = array<i32>} : memref<8x128xf32, #tpu.memory_space<vmem>>, vector<8x128xf32>,
    %c4_i32 = arith.constant 4 : i32
    %c8_i32_100 = arith.constant 8 : i32
    %182 = arith.muli %c4_i32, %c8_i32_100 : i32
    %c0_i32_101 = arith.constant 0 : i32
    %183 = arith.addi %c0_i32_101, %182 : i32
    %184 = tpu.assume_multiple %183, 8 : i32
    %185 = arith.index_cast %184 : i32 to index
    %c0_102 = arith.constant 0 : index
    %186 = vector.load %arg10[%185, %c0_102] : memref<64x512xf32, #tpu.memory_space<vmem>>, vector<8x512xf32>
    %c0_103 = arith.constant 0 : index
    %c0_104 = arith.constant 0 : index
    %187 = vector.load %arg8[%c0_103, %c0_104] : memref<8x128xf32, #tpu.memory_space<vmem>>, vector<8x128xf32>
    %c0_105 = arith.constant 0 : index
    %c0_106 = arith.constant 0 : index
    %188 = vector.load %arg3[%c0_105, %c0_106] : memref<128x512xf32, #tpu.memory_space<vmem>>, vector<128x512xf32>
    %cst_107 = arith.constant dense<0.000000e+00> : vector<8x512xf32>
    %189 = tpu.matmul %187, %188, %cst_107 {dimension_numbers = #tpu.dot_dimension_numbers<[1], [0], [0], [1], [0, 0, 1, 1], [], []>} : vector<8x128xf32>, vector<128x512xf32>, vector<8x512xf32> -> vector<8x512xf32>
    %190 = arith.addf %186, %189 : vector<8x512xf32>
    %191 = vector.extract_strided_slice %190 {offsets = [0, 0], sizes = [8, 128], strides = [1, 1]} : vector<8x512xf32> to vector<8x128xf32>
    %cst_108 = arith.constant 5.000000e-01 : f32
    %192 = vector.broadcast %cst_108 : f32 to vector<8x128xf32>
    %193 = arith.mulf %192, %191 : vector<8x128xf32>
    %194 = math.tanh %193 : vector<8x128xf32>
    %cst_109 = arith.constant 5.000000e-01 : f32
    %195 = vector.broadcast %cst_109 : f32 to vector<8x128xf32>
    %196 = arith.mulf %195, %194 : vector<8x128xf32>
    %cst_110 = arith.constant 5.000000e-01 : f32
    %197 = vector.broadcast %cst_110 : f32 to vector<8x128xf32>
    %198 = arith.addf %196, %197 : vector<8x128xf32>
    %199 = vector.extract_strided_slice %190 {offsets = [0, 128], sizes = [8, 128], strides = [1, 1]} : vector<8x512xf32> to vector<8x128xf32>
    %cst_111 = arith.constant 5.000000e-01 : f32
    %200 = vector.broadcast %cst_111 : f32 to vector<8x128xf32>
    %201 = arith.mulf %200, %199 : vector<8x128xf32>
    %202 = math.tanh %201 : vector<8x128xf32>
    %cst_112 = arith.constant 5.000000e-01 : f32
    %203 = vector.broadcast %cst_112 : f32 to vector<8x128xf32>
    %204 = arith.mulf %203, %202 : vector<8x128xf32>
    %cst_113 = arith.constant 5.000000e-01 : f32
    %205 = vector.broadcast %cst_113 : f32 to vector<8x128xf32>
    %206 = arith.addf %204, %205 : vector<8x128xf32>
    %207 = vector.extract_strided_slice %190 {offsets = [0, 256], sizes = [8, 128], strides = [1, 1]} : vector<8x512xf32> to vector<8x128xf32>
    %208 = math.tanh %207 : vector<8x128xf32>
    %209 = vector.extract_strided_slice %190 {offsets = [0, 384], sizes = [8, 128], strides = [1, 1]} : vector<8x512xf32> to vector<8x128xf32>
    %cst_114 = arith.constant 5.000000e-01 : f32
    %210 = vector.broadcast %cst_114 : f32 to vector<8x128xf32>
    %211 = arith.mulf %210, %209 : vector<8x128xf32>
    %212 = math.tanh %211 : vector<8x128xf32>
    %cst_115 = arith.constant 5.000000e-01 : f32
    %213 = vector.broadcast %cst_115 : f32 to vector<8x128xf32>
    %214 = arith.mulf %213, %212 : vector<8x128xf32>
    %cst_116 = arith.constant 5.000000e-01 : f32
    %215 = vector.broadcast %cst_116 : f32 to vector<8x128xf32>
    %216 = arith.addf %214, %215 : vector<8x128xf32>
    %c0_117 = arith.constant 0 : index
    %c0_118 = arith.constant 0 : index
    %217 = vector.load %arg9[%c0_117, %c0_118] : memref<8x128xf32, #tpu.memory_space<vmem>>, vector<8x128xf32>
    %218 = arith.mulf %206, %217 : vector<8x128xf32>
    %219 = arith.mulf %198, %208 : vector<8x128xf32>
    %220 = arith.addf %218, %219 : vector<8x128xf32>
    %c0_119 = arith.constant 0 : index
    %c0_120 = arith.constant 0 : index
    %221 = vector.load %arg9[%c0_119, %c0_120] : memref<8x128xf32, #tpu.memory_space<vmem>>, vector<8x128xf32>
    tpu.vector_store %arg9[%c0_119, %c0_120], %220 {strides = array<i32>} : memref<8x128xf32, #tpu.memory_space<vmem>>, vector<8x128xf32>,
    %222 = math.tanh %220 : vector<8x128xf32>
    %223 = arith.mulf %216, %222 : vector<8x128xf32>
    %c0_121 = arith.constant 0 : index
    %c0_122 = arith.constant 0 : index
    %224 = vector.load %arg8[%c0_121, %c0_122] : memref<8x128xf32, #tpu.memory_space<vmem>>, vector<8x128xf32>
    tpu.vector_store %arg8[%c0_121, %c0_122], %223 {strides = array<i32>} : memref<8x128xf32, #tpu.memory_space<vmem>>, vector<8x128xf32>,
    %c5_i32 = arith.constant 5 : i32
    %c8_i32_123 = arith.constant 8 : i32
    %225 = arith.muli %c5_i32, %c8_i32_123 : i32
    %c0_i32_124 = arith.constant 0 : i32
    %226 = arith.addi %c0_i32_124, %225 : i32
    %227 = tpu.assume_multiple %226, 8 : i32
    %228 = arith.index_cast %227 : i32 to index
    %c0_125 = arith.constant 0 : index
    %229 = vector.load %arg10[%228, %c0_125] : memref<64x512xf32, #tpu.memory_space<vmem>>, vector<8x512xf32>
    %c0_126 = arith.constant 0 : index
    %c0_127 = arith.constant 0 : index
    %230 = vector.load %arg8[%c0_126, %c0_127] : memref<8x128xf32, #tpu.memory_space<vmem>>, vector<8x128xf32>
    %c0_128 = arith.constant 0 : index
    %c0_129 = arith.constant 0 : index
    %231 = vector.load %arg3[%c0_128, %c0_129] : memref<128x512xf32, #tpu.memory_space<vmem>>, vector<128x512xf32>
    %cst_130 = arith.constant dense<0.000000e+00> : vector<8x512xf32>
    %232 = tpu.matmul %230, %231, %cst_130 {dimension_numbers = #tpu.dot_dimension_numbers<[1], [0], [0], [1], [0, 0, 1, 1], [], []>} : vector<8x128xf32>, vector<128x512xf32>, vector<8x512xf32> -> vector<8x512xf32>
    %233 = arith.addf %229, %232 : vector<8x512xf32>
    %234 = vector.extract_strided_slice %233 {offsets = [0, 0], sizes = [8, 128], strides = [1, 1]} : vector<8x512xf32> to vector<8x128xf32>
    %cst_131 = arith.constant 5.000000e-01 : f32
    %235 = vector.broadcast %cst_131 : f32 to vector<8x128xf32>
    %236 = arith.mulf %235, %234 : vector<8x128xf32>
    %237 = math.tanh %236 : vector<8x128xf32>
    %cst_132 = arith.constant 5.000000e-01 : f32
    %238 = vector.broadcast %cst_132 : f32 to vector<8x128xf32>
    %239 = arith.mulf %238, %237 : vector<8x128xf32>
    %cst_133 = arith.constant 5.000000e-01 : f32
    %240 = vector.broadcast %cst_133 : f32 to vector<8x128xf32>
    %241 = arith.addf %239, %240 : vector<8x128xf32>
    %242 = vector.extract_strided_slice %233 {offsets = [0, 128], sizes = [8, 128], strides = [1, 1]} : vector<8x512xf32> to vector<8x128xf32>
    %cst_134 = arith.constant 5.000000e-01 : f32
    %243 = vector.broadcast %cst_134 : f32 to vector<8x128xf32>
    %244 = arith.mulf %243, %242 : vector<8x128xf32>
    %245 = math.tanh %244 : vector<8x128xf32>
    %cst_135 = arith.constant 5.000000e-01 : f32
    %246 = vector.broadcast %cst_135 : f32 to vector<8x128xf32>
    %247 = arith.mulf %246, %245 : vector<8x128xf32>
    %cst_136 = arith.constant 5.000000e-01 : f32
    %248 = vector.broadcast %cst_136 : f32 to vector<8x128xf32>
    %249 = arith.addf %247, %248 : vector<8x128xf32>
    %250 = vector.extract_strided_slice %233 {offsets = [0, 256], sizes = [8, 128], strides = [1, 1]} : vector<8x512xf32> to vector<8x128xf32>
    %251 = math.tanh %250 : vector<8x128xf32>
    %252 = vector.extract_strided_slice %233 {offsets = [0, 384], sizes = [8, 128], strides = [1, 1]} : vector<8x512xf32> to vector<8x128xf32>
    %cst_137 = arith.constant 5.000000e-01 : f32
    %253 = vector.broadcast %cst_137 : f32 to vector<8x128xf32>
    %254 = arith.mulf %253, %252 : vector<8x128xf32>
    %255 = math.tanh %254 : vector<8x128xf32>
    %cst_138 = arith.constant 5.000000e-01 : f32
    %256 = vector.broadcast %cst_138 : f32 to vector<8x128xf32>
    %257 = arith.mulf %256, %255 : vector<8x128xf32>
    %cst_139 = arith.constant 5.000000e-01 : f32
    %258 = vector.broadcast %cst_139 : f32 to vector<8x128xf32>
    %259 = arith.addf %257, %258 : vector<8x128xf32>
    %c0_140 = arith.constant 0 : index
    %c0_141 = arith.constant 0 : index
    %260 = vector.load %arg9[%c0_140, %c0_141] : memref<8x128xf32, #tpu.memory_space<vmem>>, vector<8x128xf32>
    %261 = arith.mulf %249, %260 : vector<8x128xf32>
    %262 = arith.mulf %241, %251 : vector<8x128xf32>
    %263 = arith.addf %261, %262 : vector<8x128xf32>
    %c0_142 = arith.constant 0 : index
    %c0_143 = arith.constant 0 : index
    %264 = vector.load %arg9[%c0_142, %c0_143] : memref<8x128xf32, #tpu.memory_space<vmem>>, vector<8x128xf32>
    tpu.vector_store %arg9[%c0_142, %c0_143], %263 {strides = array<i32>} : memref<8x128xf32, #tpu.memory_space<vmem>>, vector<8x128xf32>,
    %265 = math.tanh %263 : vector<8x128xf32>
    %266 = arith.mulf %259, %265 : vector<8x128xf32>
    %c0_144 = arith.constant 0 : index
    %c0_145 = arith.constant 0 : index
    %267 = vector.load %arg8[%c0_144, %c0_145] : memref<8x128xf32, #tpu.memory_space<vmem>>, vector<8x128xf32>
    tpu.vector_store %arg8[%c0_144, %c0_145], %266 {strides = array<i32>} : memref<8x128xf32, #tpu.memory_space<vmem>>, vector<8x128xf32>,
    %c6_i32 = arith.constant 6 : i32
    %c8_i32_146 = arith.constant 8 : i32
    %268 = arith.muli %c6_i32, %c8_i32_146 : i32
    %c0_i32_147 = arith.constant 0 : i32
    %269 = arith.addi %c0_i32_147, %268 : i32
    %270 = tpu.assume_multiple %269, 8 : i32
    %271 = arith.index_cast %270 : i32 to index
    %c0_148 = arith.constant 0 : index
    %272 = vector.load %arg10[%271, %c0_148] : memref<64x512xf32, #tpu.memory_space<vmem>>, vector<8x512xf32>
    %c0_149 = arith.constant 0 : index
    %c0_150 = arith.constant 0 : index
    %273 = vector.load %arg8[%c0_149, %c0_150] : memref<8x128xf32, #tpu.memory_space<vmem>>, vector<8x128xf32>
    %c0_151 = arith.constant 0 : index
    %c0_152 = arith.constant 0 : index
    %274 = vector.load %arg3[%c0_151, %c0_152] : memref<128x512xf32, #tpu.memory_space<vmem>>, vector<128x512xf32>
    %cst_153 = arith.constant dense<0.000000e+00> : vector<8x512xf32>
    %275 = tpu.matmul %273, %274, %cst_153 {dimension_numbers = #tpu.dot_dimension_numbers<[1], [0], [0], [1], [0, 0, 1, 1], [], []>} : vector<8x128xf32>, vector<128x512xf32>, vector<8x512xf32> -> vector<8x512xf32>
    %276 = arith.addf %272, %275 : vector<8x512xf32>
    %277 = vector.extract_strided_slice %276 {offsets = [0, 0], sizes = [8, 128], strides = [1, 1]} : vector<8x512xf32> to vector<8x128xf32>
    %cst_154 = arith.constant 5.000000e-01 : f32
    %278 = vector.broadcast %cst_154 : f32 to vector<8x128xf32>
    %279 = arith.mulf %278, %277 : vector<8x128xf32>
    %280 = math.tanh %279 : vector<8x128xf32>
    %cst_155 = arith.constant 5.000000e-01 : f32
    %281 = vector.broadcast %cst_155 : f32 to vector<8x128xf32>
    %282 = arith.mulf %281, %280 : vector<8x128xf32>
    %cst_156 = arith.constant 5.000000e-01 : f32
    %283 = vector.broadcast %cst_156 : f32 to vector<8x128xf32>
    %284 = arith.addf %282, %283 : vector<8x128xf32>
    %285 = vector.extract_strided_slice %276 {offsets = [0, 128], sizes = [8, 128], strides = [1, 1]} : vector<8x512xf32> to vector<8x128xf32>
    %cst_157 = arith.constant 5.000000e-01 : f32
    %286 = vector.broadcast %cst_157 : f32 to vector<8x128xf32>
    %287 = arith.mulf %286, %285 : vector<8x128xf32>
    %288 = math.tanh %287 : vector<8x128xf32>
    %cst_158 = arith.constant 5.000000e-01 : f32
    %289 = vector.broadcast %cst_158 : f32 to vector<8x128xf32>
    %290 = arith.mulf %289, %288 : vector<8x128xf32>
    %cst_159 = arith.constant 5.000000e-01 : f32
    %291 = vector.broadcast %cst_159 : f32 to vector<8x128xf32>
    %292 = arith.addf %290, %291 : vector<8x128xf32>
    %293 = vector.extract_strided_slice %276 {offsets = [0, 256], sizes = [8, 128], strides = [1, 1]} : vector<8x512xf32> to vector<8x128xf32>
    %294 = math.tanh %293 : vector<8x128xf32>
    %295 = vector.extract_strided_slice %276 {offsets = [0, 384], sizes = [8, 128], strides = [1, 1]} : vector<8x512xf32> to vector<8x128xf32>
    %cst_160 = arith.constant 5.000000e-01 : f32
    %296 = vector.broadcast %cst_160 : f32 to vector<8x128xf32>
    %297 = arith.mulf %296, %295 : vector<8x128xf32>
    %298 = math.tanh %297 : vector<8x128xf32>
    %cst_161 = arith.constant 5.000000e-01 : f32
    %299 = vector.broadcast %cst_161 : f32 to vector<8x128xf32>
    %300 = arith.mulf %299, %298 : vector<8x128xf32>
    %cst_162 = arith.constant 5.000000e-01 : f32
    %301 = vector.broadcast %cst_162 : f32 to vector<8x128xf32>
    %302 = arith.addf %300, %301 : vector<8x128xf32>
    %c0_163 = arith.constant 0 : index
    %c0_164 = arith.constant 0 : index
    %303 = vector.load %arg9[%c0_163, %c0_164] : memref<8x128xf32, #tpu.memory_space<vmem>>, vector<8x128xf32>
    %304 = arith.mulf %292, %303 : vector<8x128xf32>
    %305 = arith.mulf %284, %294 : vector<8x128xf32>
    %306 = arith.addf %304, %305 : vector<8x128xf32>
    %c0_165 = arith.constant 0 : index
    %c0_166 = arith.constant 0 : index
    %307 = vector.load %arg9[%c0_165, %c0_166] : memref<8x128xf32, #tpu.memory_space<vmem>>, vector<8x128xf32>
    tpu.vector_store %arg9[%c0_165, %c0_166], %306 {strides = array<i32>} : memref<8x128xf32, #tpu.memory_space<vmem>>, vector<8x128xf32>,
    %308 = math.tanh %306 : vector<8x128xf32>
    %309 = arith.mulf %302, %308 : vector<8x128xf32>
    %c0_167 = arith.constant 0 : index
    %c0_168 = arith.constant 0 : index
    %310 = vector.load %arg8[%c0_167, %c0_168] : memref<8x128xf32, #tpu.memory_space<vmem>>, vector<8x128xf32>
    tpu.vector_store %arg8[%c0_167, %c0_168], %309 {strides = array<i32>} : memref<8x128xf32, #tpu.memory_space<vmem>>, vector<8x128xf32>,
    %c7_i32 = arith.constant 7 : i32
    %c8_i32_169 = arith.constant 8 : i32
    %311 = arith.muli %c7_i32, %c8_i32_169 : i32
    %c0_i32_170 = arith.constant 0 : i32
    %312 = arith.addi %c0_i32_170, %311 : i32
    %313 = tpu.assume_multiple %312, 8 : i32
    %314 = arith.index_cast %313 : i32 to index
    %c0_171 = arith.constant 0 : index
    %315 = vector.load %arg10[%314, %c0_171] : memref<64x512xf32, #tpu.memory_space<vmem>>, vector<8x512xf32>
    %c0_172 = arith.constant 0 : index
    %c0_173 = arith.constant 0 : index
    %316 = vector.load %arg8[%c0_172, %c0_173] : memref<8x128xf32, #tpu.memory_space<vmem>>, vector<8x128xf32>
    %c0_174 = arith.constant 0 : index
    %c0_175 = arith.constant 0 : index
    %317 = vector.load %arg3[%c0_174, %c0_175] : memref<128x512xf32, #tpu.memory_space<vmem>>, vector<128x512xf32>
    %cst_176 = arith.constant dense<0.000000e+00> : vector<8x512xf32>
    %318 = tpu.matmul %316, %317, %cst_176 {dimension_numbers = #tpu.dot_dimension_numbers<[1], [0], [0], [1], [0, 0, 1, 1], [], []>} : vector<8x128xf32>, vector<128x512xf32>, vector<8x512xf32> -> vector<8x512xf32>
    %319 = arith.addf %315, %318 : vector<8x512xf32>
    %320 = vector.extract_strided_slice %319 {offsets = [0, 0], sizes = [8, 128], strides = [1, 1]} : vector<8x512xf32> to vector<8x128xf32>
    %cst_177 = arith.constant 5.000000e-01 : f32
    %321 = vector.broadcast %cst_177 : f32 to vector<8x128xf32>
    %322 = arith.mulf %321, %320 : vector<8x128xf32>
    %323 = math.tanh %322 : vector<8x128xf32>
    %cst_178 = arith.constant 5.000000e-01 : f32
    %324 = vector.broadcast %cst_178 : f32 to vector<8x128xf32>
    %325 = arith.mulf %324, %323 : vector<8x128xf32>
    %cst_179 = arith.constant 5.000000e-01 : f32
    %326 = vector.broadcast %cst_179 : f32 to vector<8x128xf32>
    %327 = arith.addf %325, %326 : vector<8x128xf32>
    %328 = vector.extract_strided_slice %319 {offsets = [0, 128], sizes = [8, 128], strides = [1, 1]} : vector<8x512xf32> to vector<8x128xf32>
    %cst_180 = arith.constant 5.000000e-01 : f32
    %329 = vector.broadcast %cst_180 : f32 to vector<8x128xf32>
    %330 = arith.mulf %329, %328 : vector<8x128xf32>
    %331 = math.tanh %330 : vector<8x128xf32>
    %cst_181 = arith.constant 5.000000e-01 : f32
    %332 = vector.broadcast %cst_181 : f32 to vector<8x128xf32>
    %333 = arith.mulf %332, %331 : vector<8x128xf32>
    %cst_182 = arith.constant 5.000000e-01 : f32
    %334 = vector.broadcast %cst_182 : f32 to vector<8x128xf32>
    %335 = arith.addf %333, %334 : vector<8x128xf32>
    %336 = vector.extract_strided_slice %319 {offsets = [0, 256], sizes = [8, 128], strides = [1, 1]} : vector<8x512xf32> to vector<8x128xf32>
    %337 = math.tanh %336 : vector<8x128xf32>
    %338 = vector.extract_strided_slice %319 {offsets = [0, 384], sizes = [8, 128], strides = [1, 1]} : vector<8x512xf32> to vector<8x128xf32>
    %cst_183 = arith.constant 5.000000e-01 : f32
    %339 = vector.broadcast %cst_183 : f32 to vector<8x128xf32>
    %340 = arith.mulf %339, %338 : vector<8x128xf32>
    %341 = math.tanh %340 : vector<8x128xf32>
    %cst_184 = arith.constant 5.000000e-01 : f32
    %342 = vector.broadcast %cst_184 : f32 to vector<8x128xf32>
    %343 = arith.mulf %342, %341 : vector<8x128xf32>
    %cst_185 = arith.constant 5.000000e-01 : f32
    %344 = vector.broadcast %cst_185 : f32 to vector<8x128xf32>
    %345 = arith.addf %343, %344 : vector<8x128xf32>
    %c0_186 = arith.constant 0 : index
    %c0_187 = arith.constant 0 : index
    %346 = vector.load %arg9[%c0_186, %c0_187] : memref<8x128xf32, #tpu.memory_space<vmem>>, vector<8x128xf32>
    %347 = arith.mulf %335, %346 : vector<8x128xf32>
    %348 = arith.mulf %327, %337 : vector<8x128xf32>
    %349 = arith.addf %347, %348 : vector<8x128xf32>
    %c0_188 = arith.constant 0 : index
    %c0_189 = arith.constant 0 : index
    %350 = vector.load %arg9[%c0_188, %c0_189] : memref<8x128xf32, #tpu.memory_space<vmem>>, vector<8x128xf32>
    tpu.vector_store %arg9[%c0_188, %c0_189], %349 {strides = array<i32>} : memref<8x128xf32, #tpu.memory_space<vmem>>, vector<8x128xf32>,
    %351 = math.tanh %349 : vector<8x128xf32>
    %352 = arith.mulf %345, %351 : vector<8x128xf32>
    %c0_190 = arith.constant 0 : index
    %c0_191 = arith.constant 0 : index
    %353 = vector.load %arg8[%c0_190, %c0_191] : memref<8x128xf32, #tpu.memory_space<vmem>>, vector<8x128xf32>
    tpu.vector_store %arg8[%c0_190, %c0_191], %352 {strides = array<i32>} : memref<8x128xf32, #tpu.memory_space<vmem>>, vector<8x128xf32>,
    %c8_i32_192 = arith.constant 8 : i32
    %c0_193 = arith.constant 0 : index
    %c0_194 = arith.constant 0 : index
    %354 = vector.load %arg8[%c0_193, %c0_194] : memref<8x128xf32, #tpu.memory_space<vmem>>, vector<8x128xf32>
    %c0_195 = arith.constant 0 : index
    %c0_196 = arith.constant 0 : index
    %355 = vector.load %arg5[%c0_195, %c0_196] : memref<128x128xf32, #tpu.memory_space<vmem>>, vector<128x128xf32>
    %cst_197 = arith.constant dense<0.000000e+00> : vector<8x128xf32>
    %356 = tpu.matmul %354, %355, %cst_197 {dimension_numbers = #tpu.dot_dimension_numbers<[1], [0], [0], [1], [0, 0, 1, 1], [], []>} : vector<8x128xf32>, vector<128x128xf32>, vector<8x128xf32> -> vector<8x128xf32>
    %c0_198 = arith.constant 0 : index
    %c0_199 = arith.constant 0 : index
    %357 = vector.load %arg6[%c0_198, %c0_199] : memref<1x128xf32, #tpu.memory_space<vmem>>, vector<1x128xf32>
    %358 = vector.broadcast %357 : vector<1x128xf32> to vector<8x128xf32>
    %359 = arith.addf %356, %358 : vector<8x128xf32>
    %c0_200 = arith.constant 0 : index
    %c0_201 = arith.constant 0 : index
    %360 = vector.load %arg7[%c0_200, %c0_201] : memref<8x128xf32, #tpu.memory_space<vmem>>, vector<8x128xf32>
    tpu.vector_store %arg7[%c0_200, %c0_201], %359 {strides = array<i32>} : memref<8x128xf32, #tpu.memory_space<vmem>>, vector<8x128xf32>,
    return
  }
  func.func @transform_0(%arg0: i32) -> (i32, i32) {
    %c0_i32 = arith.constant 0 : i32
    %c0_i32_0 = arith.constant 0 : i32
    return %arg0, %c0_i32 : i32, i32
  }
  func.func @transform_1(%arg0: i32) -> (i32, i32) {
    %c0_i32 = arith.constant 0 : i32
    %c0_i32_0 = arith.constant 0 : i32
    %c0_i32_1 = arith.constant 0 : i32
    return %c0_i32, %c0_i32_0 : i32, i32
  }
  func.func @transform_2(%arg0: i32) -> (i32, i32) {
    %c0_i32 = arith.constant 0 : i32
    %c0_i32_0 = arith.constant 0 : i32
    %c0_i32_1 = arith.constant 0 : i32
    return %c0_i32, %c0_i32_0 : i32, i32
  }
  func.func @transform_3(%arg0: i32) -> (i32, i32) {
    %c0_i32 = arith.constant 0 : i32
    %c0_i32_0 = arith.constant 0 : i32
    %c0_i32_1 = arith.constant 0 : i32
    return %c0_i32, %c0_i32_0 : i32, i32
  }
  func.func @transform_4(%arg0: i32) -> (i32, i32) {
    %c0_i32 = arith.constant 0 : i32
    %c0_i32_0 = arith.constant 0 : i32
    %c0_i32_1 = arith.constant 0 : i32
    return %c0_i32, %c0_i32_0 : i32, i32
  }
  func.func @transform_5(%arg0: i32) -> (i32, i32) {
    %c0_i32 = arith.constant 0 : i32
    %c0_i32_0 = arith.constant 0 : i32
    %c0_i32_1 = arith.constant 0 : i32
    return %c0_i32, %c0_i32_0 : i32, i32
  }
  func.func @transform_6(%arg0: i32) -> (i32, i32) {
    %c0_i32 = arith.constant 0 : i32
    %c0_i32_0 = arith.constant 0 : i32
    %c0_i32_1 = arith.constant 0 : i32
    return %c0_i32, %c0_i32_0 : i32, i32
  }
}

</mosaic_0001>

<llo_original>
// kernel: tpu_custom_call.1
$region0: #{tpu_custom_call.1}
  #allocation0 [shape = 'u32[]', space=smem, size = 0x4, offset = 0x4, fixed_abs, tag = 'smem constant byte address 0x4 - core index']
  #allocation1 [shape = 'u32[72,128]{1,0:T(1,128)}', space=vmem, size = 0x9000, scoped, tag = 'internal scratch']
  #allocation2 [shape = 'f32[8,128]{1,0:T(8,128)}', space=vmem, size = 0x1000, scoped, tag = 'scratch operand']
  #allocation3 [shape = 'f32[8,128]{1,0:T(8,128)}', space=vmem, size = 0x1000, scoped, tag = 'scratch operand']
  #allocation4 [shape = 'f32[64,512]{1,0:T(8,128)}', space=vmem, size = 0x20000, scoped, tag = 'scratch operand']
  %s0 = inlined_call_operand.vmem [shape: f32[64,4], index: 0, kind: input, shape index: {}]
  %s1 = inlined_call_operand.vmem [shape: f32[4,512], index: 1, kind: input, shape index: {}]
  %s2 = inlined_call_operand.hbm [shape: f32[128,512], index: 2, kind: input, shape index: {}]
  %s3 = inlined_call_operand.vmem [shape: f32[1,512], index: 3, kind: input, shape index: {}]
  %s4 = inlined_call_operand.hbm [shape: f32[128,128], index: 4, kind: input, shape index: {}]
  %s5 = inlined_call_operand.vmem [shape: f32[1,128], index: 5, kind: input, shape index: {}]
  %s6 = inlined_call_operand.hbm [shape: f32[8,128], index: 6, kind: output, shape index: {}]
  %s7 = sld [smem:[#allocation0]]
  $region46: #{tpu_custom_call.1} parent=0
    _
  %s9 = ssub.s32 1, %s7
  %s10 = scalar_select 0, %s9, %s7
  $region1: #{tpu_custom_call.1} parent=0
    #allocation5 [shape = 'u8[262144]{0}', space=vmem, size = 0x40000, scoped, tag = 'input window, operand 2, single buffered']
    #allocation6 [shape = 's32[1]{0}', space=sflag, size = 0x4, scoped, tag = 'scoped memory for tpu_custom_call.1']
    #allocation7 [shape = 's32[1]{0}', space=sflag, size = 0x4, scoped, tag = 'scoped memory for tpu_custom_call.1']
    #allocation8 [shape = 'u8[65536]{0}', space=vmem, size = 0x10000, scoped, tag = 'input window, operand 4, single buffered']
    #allocation9 [shape = 's32[1]{0}', space=sflag, size = 0x4, scoped, tag = 'scoped memory for tpu_custom_call.1']
    #allocation10 [shape = 'u8[4096]{0}', space=vmem, size = 0x1000, scoped, tag = 'output window, operand 0, single buffered']
    %11 = vsyncpa [#allocation6], 0
    %12 = vsyncpa [#allocation9], 0
    %13 = vsyncpa [#allocation7], 0
    // Predicated region
    $region2: #{tpu_custom_call.1} parent=1 // pred_check
      _
    $region3: #{tpu_custom_call.1} parent=1 // pred_check_branch
      %15 = sbr.rel (0) target = $region5
    $region4: #{tpu_custom_call.1} parent=1 // pred_region
      _
    $region5: #{tpu_custom_call.1} parent=1 // pred_fallthru
      _
    // Predicated region
    $region6: #{tpu_custom_call.1} parent=1 // pred_check
      _
    $region7: #{tpu_custom_call.1} parent=1 // pred_check_branch
      %17 = sbr.rel (0) target = $region9
    $region8: #{tpu_custom_call.1} parent=1 // pred_region
      _
    $region9: #{tpu_custom_call.1} parent=1 // pred_fallthru
      _
    // Predicated region
    $region10: #{tpu_custom_call.1} parent=1 // pred_check
      _
    $region11: #{tpu_custom_call.1} parent=1 // pred_check_branch
      %19 = sbr.rel (0) target = $region13
    $region12: #{tpu_custom_call.1} parent=1 // pred_region
      %21 = vsyncadd [#allocation6], 0
      %s22 = sshll.u32 %s2, 4
      %s23 = int_to_ptr.hbm [resolvable:$true] %s22
      %s24 = sshll.u32 [#allocation5], 4
      %s25 = int_to_ptr.vmem [resolvable:$true] %s24
      %30 = dma.hbm_to_vmem [thread:$0]  %s23, 8192, %s25, [#allocation6], 512, 512, 32
    $region13: #{tpu_custom_call.1} parent=1 // pred_fallthru
      _
    // Predicated region
    $region14: #{tpu_custom_call.1} parent=1 // pred_check
      _
    $region15: #{tpu_custom_call.1} parent=1 // pred_check_branch
      %32 = sbr.rel (0) target = $region17
    $region16: #{tpu_custom_call.1} parent=1 // pred_region
      _
    $region17: #{tpu_custom_call.1} parent=1 // pred_fallthru
      _
    // Predicated region
    $region18: #{tpu_custom_call.1} parent=1 // pred_check
      _
    $region19: #{tpu_custom_call.1} parent=1 // pred_check_branch
      %34 = sbr.rel (0) target = $region21
    $region20: #{tpu_custom_call.1} parent=1 // pred_region
      %36 = vsyncadd [#allocation9], 0
      %s37 = sshll.u32 %s4, 4
      %s38 = int_to_ptr.hbm [resolvable:$true] %s37
      %s39 = sshll.u32 [#allocation8], 4
      %s40 = int_to_ptr.vmem [resolvable:$true] %s39
      %45 = dma.hbm_to_vmem [thread:$0]  %s38, 2048, %s40, [#allocation9], 128, 128, 8
    $region21: #{tpu_custom_call.1} parent=1 // pred_fallthru
      _
    // Predicated region
    $region22: #{tpu_custom_call.1} parent=1 // pred_check
      _
    $region23: #{tpu_custom_call.1} parent=1 // pred_check_branch
      %47 = sbr.rel (0) target = $region25
    $region24: #{tpu_custom_call.1} parent=1 // pred_region
      _
    $region25: #{tpu_custom_call.1} parent=1 // pred_fallthru
      _
    // Predicated region
    $region26: #{tpu_custom_call.1} parent=1 // pred_check
      _
    $region27: #{tpu_custom_call.1} parent=1 // pred_check_branch
      %49 = sbr.rel (0) target = $region29
    $region28: #{tpu_custom_call.1} parent=1 // pred_region
      %51 = dma.done [#allocation6], 8192
    $region29: #{tpu_custom_call.1} parent=1 // pred_fallthru
      _
    // Predicated region
    $region30: #{tpu_custom_call.1} parent=1 // pred_check
      _
    $region31: #{tpu_custom_call.1} parent=1 // pred_check_branch
      %53 = sbr.rel (0) target = $region33
    $region32: #{tpu_custom_call.1} parent=1 // pred_region
      %55 = dma.done [#allocation9], 2048
    $region33: #{tpu_custom_call.1} parent=1 // pred_fallthru
      _
    %p56 = scmp.eq.s32.totalorder 0, 0
    // Predicated region
    $region34: #{tpu_custom_call.1} parent=1 // pred_check
      %p57 = pneg %p56
    $region35: #{tpu_custom_call.1} parent=1 // pred_check_branch
      %59 = sbr.rel (%p57) target = $region37
    $region36: #{tpu_custom_call.1} parent=1 // pred_region
      %60 = vst [vmem:[#allocation2] sm:$0xff] 0.0
      %61 = vst [vmem:[#allocation3] sm:$0xff] 0.0
    $region37: #{tpu_custom_call.1} parent=1 // pred_fallthru
      _
    %v62 = vld [vmem:[%s0] sm:$0xff]
    %v63 = vld [vmem:[%s0 + $0x8] sm:$0xff]
    %v64 = vld [vmem:[%s0 + $0x10] sm:$0xff]
    %v65 = vld [vmem:[%s0 + $0x18] sm:$0xff]
    %v66 = vld [vmem:[%s0 + $0x20] sm:$0xff]
    %v67 = vld [vmem:[%s0 + $0x28] sm:$0xff]
    %v68 = vld [vmem:[%s0 + $0x30] sm:$0xff]
    %v69 = vld [vmem:[%s0 + $0x38] sm:$0xff]
    %v70 = vld [vmem:[%s1] sm:$0xff]
    %v71 = vld [vmem:[%s1 + $0x8] sm:$0xff]
    %v72 = vld [vmem:[%s3] sm:$0xf]
    %v74 = vperm.slane %v72, 0
    %v75 = vperm.slane %v72, 1
    %v76 = vperm.slane %v72, 2
    %v77 = vperm.slane %v72, 3
    %84 = vst [vmem:[#allocation1] ss:$2 sm:$0xff] %v70
    %s85 = scalar_lea.vmem [#allocation1], 16
    %86 = vst [vmem:[%s85] ss:$2 sm:$0xff] %v71
    %v87 = vld.sshfl [vmem:[#allocation1] sm:$0xff pattern:$0x75316420]
    %v88 = vld.sshfl [vmem:[#allocation1 + $0x8] sm:$0xff pattern:$0x75316420]
    %v89 = vld.sshfl [vmem:[#allocation1 + $0x10] sm:$0xff pattern:$0x75316420]
    %v90 = vld.sshfl [vmem:[#allocation1 + $0x18] sm:$0xff pattern:$0x75316420]
    %vm91 = vcmask 31744
    %v93 = vsel %vm91, %v62, 0
    %v96 = vsel %vm91, %v63, 0
    %v99 = vsel %vm91, %v64, 0
    %v102 = vsel %vm91, %v65, 0
    %v105 = vsel %vm91, %v66, 0
    %v108 = vsel %vm91, %v67, 0
    %v111 = vsel %vm91, %v68, 0
    %v114 = vsel %vm91, %v69, 0
    %vm116 = vcmask 1043456
    %v117 = vsel %vm116, %v87, 0
    %v119 = vsel %vm116, %v88, 0
    %v121 = vsel %vm116, %v89, 0
    %v123 = vsel %vm116, %v90, 0
    %125 = vmatpush.msra.mxu0 0.0
    %126 = vmatpush.msra.mxu0 0.0
    %127 = vmatpush.msra.mxu0 0.0
    %128 = vmatpush.msra.mxu0 0.0
    %129 = vmatpush.msra.mxu0 0.0
    %130 = vmatpush.msra.mxu0 0.0
    %131 = vmatpush.msra.mxu0 0.0
    %132 = vmatpush.msra.mxu0 0.0
    %133 = vmatpush.msra.mxu0 0.0
    %134 = vmatpush.msra.mxu0 0.0
    %135 = vmatpush.msra.mxu0 0.0
    %136 = vmatpush.msra.mxu0 0.0
    %137 = vmatpush.msra.mxu0 0.0
    %138 = vmatpush.msra.mxu0 0.0
    %139 = vmatpush.msra.mxu0 0.0
    %140 = vmatpush.msra.mxu0 %v117
    %141 = vmatmul.f32.gmra.mxu0 %v93
    %v142 = vpop.f32.mrf.mxu0
    %v143 = vadd.f32 %v74, %v142
    %144 = vmatmul.f32.gmra.mxu0 %v96
    %v145 = vpop.f32.mrf.mxu0
    %v146 = vadd.f32 %v74, %v145
    %147 = vmatmul.f32.gmra.mxu0 %v99
    %v148 = vpop.f32.mrf.mxu0
    %v149 = vadd.f32 %v74, %v148
    %150 = vmatmul.f32.gmra.mxu0 %v102
    %v151 = vpop.f32.mrf.mxu0
    %v152 = vadd.f32 %v74, %v151
    %153 = vmatmul.f32.gmra.mxu0 %v105
    %v154 = vpop.f32.mrf.mxu0
    %v155 = vadd.f32 %v74, %v154
    %156 = vmatmul.f32.gmra.mxu0 %v108
    %v157 = vpop.f32.mrf.mxu0
    %v158 = vadd.f32 %v74, %v157
    %159 = vmatmul.f32.gmra.mxu0 %v111
    %v160 = vpop.f32.mrf.mxu0
    %v161 = vadd.f32 %v74, %v160
    %162 = vmatmul.f32.gmra.mxu0 %v114
    %v163 = vpop.f32.mrf.mxu0
    %v164 = vadd.f32 %v74, %v163
    %165 = vdwg.mxu0
    %166 = vmatpush.msra.mxu0 0.0
    %167 = vmatpush.msra.mxu0 0.0
    %168 = vmatpush.msra.mxu0 0.0
    %169 = vmatpush.msra.mxu0 0.0
    %170 = vmatpush.msra.mxu0 0.0
    %171 = vmatpush.msra.mxu0 0.0
    %172 = vmatpush.msra.mxu0 0.0
    %173 = vmatpush.msra.mxu0 0.0
    %174 = vmatpush.msra.mxu0 0.0
    %175 = vmatpush.msra.mxu0 0.0
    %176 = vmatpush.msra.mxu0 0.0
    %177 = vmatpush.msra.mxu0 0.0
    %178 = vmatpush.msra.mxu0 0.0
    %179 = vmatpush.msra.mxu0 0.0
    %180 = vmatpush.msra.mxu0 0.0
    %181 = vmatpush.msra.mxu0 %v119
    %182 = vmatmul.f32.gmra.mxu0 %v93
    %v183 = vpop.f32.mrf.mxu0
    %v184 = vadd.f32 %v75, %v183
    %185 = vmatmul.f32.gmra.mxu0 %v96
    %v186 = vpop.f32.mrf.mxu0
    %v187 = vadd.f32 %v75, %v186
    %188 = vmatmul.f32.gmra.mxu0 %v99
    %v189 = vpop.f32.mrf.mxu0
    %v190 = vadd.f32 %v75, %v189
    %191 = vmatmul.f32.gmra.mxu0 %v102
    %v192 = vpop.f32.mrf.mxu0
    %v193 = vadd.f32 %v75, %v192
    %194 = vmatmul.f32.gmra.mxu0 %v105
    %v195 = vpop.f32.mrf.mxu0
    %v196 = vadd.f32 %v75, %v195
    %197 = vmatmul.f32.gmra.mxu0 %v108
    %v198 = vpop.f32.mrf.mxu0
    %v199 = vadd.f32 %v75, %v198
    %200 = vmatmul.f32.gmra.mxu0 %v111
    %v201 = vpop.f32.mrf.mxu0
    %v202 = vadd.f32 %v75, %v201
    %203 = vmatmul.f32.gmra.mxu0 %v114
    %v204 = vpop.f32.mrf.mxu0
    %v205 = vadd.f32 %v75, %v204
    %206 = vdwg.mxu0
    %207 = vmatpush.msra.mxu0 0.0
    %208 = vmatpush.msra.mxu0 0.0
    %209 = vmatpush.msra.mxu0 0.0
    %210 = vmatpush.msra.mxu0 0.0
    %211 = vmatpush.msra.mxu0 0.0
    %212 = vmatpush.msra.mxu0 0.0
    %213 = vmatpush.msra.mxu0 0.0
    %214 = vmatpush.msra.mxu0 0.0
    %215 = vmatpush.msra.mxu0 0.0
    %216 = vmatpush.msra.mxu0 0.0
    %217 = vmatpush.msra.mxu0 0.0
    %218 = vmatpush.msra.mxu0 0.0
    %219 = vmatpush.msra.mxu0 0.0
    %220 = vmatpush.msra.mxu0 0.0
    %221 = vmatpush.msra.mxu0 0.0
    %222 = vmatpush.msra.mxu0 %v121
    %223 = vmatmul.f32.gmra.mxu0 %v93
    %v224 = vpop.f32.mrf.mxu0
    %v225 = vadd.f32 %v76, %v224
    %226 = vmatmul.f32.gmra.mxu0 %v96
    %v227 = vpop.f32.mrf.mxu0
    %v228 = vadd.f32 %v76, %v227
    %229 = vmatmul.f32.gmra.mxu0 %v99
    %v230 = vpop.f32.mrf.mxu0
    %v231 = vadd.f32 %v76, %v230
    %232 = vmatmul.f32.gmra.mxu0 %v102
    %v233 = vpop.f32.mrf.mxu0
    %v234 = vadd.f32 %v76, %v233
    %235 = vmatmul.f32.gmra.mxu0 %v105
    %v236 = vpop.f32.mrf.mxu0
    %v237 = vadd.f32 %v76, %v236
    %238 = vmatmul.f32.gmra.mxu0 %v108
    %v239 = vpop.f32.mrf.mxu0
    %v240 = vadd.f32 %v76, %v239
    %241 = vmatmul.f32.gmra.mxu0 %v111
    %v242 = vpop.f32.mrf.mxu0
    %v243 = vadd.f32 %v76, %v242
    %244 = vmatmul.f32.gmra.mxu0 %v114
    %v245 = vpop.f32.mrf.mxu0
    %v246 = vadd.f32 %v76, %v245
    %247 = vdwg.mxu0
    %248 = vmatpush.msra.mxu0 0.0
    %249 = vmatpush.msra.mxu0 0.0
    %250 = vmatpush.msra.mxu0 0.0
    %251 = vmatpush.msra.mxu0 0.0
    %252 = vmatpush.msra.mxu0 0.0
    %253 = vmatpush.msra.mxu0 0.0
    %254 = vmatpush.msra.mxu0 0.0
    %255 = vmatpush.msra.mxu0 0.0
    %256 = vmatpush.msra.mxu0 0.0
    %257 = vmatpush.msra.mxu0 0.0
    %258 = vmatpush.msra.mxu0 0.0
    %259 = vmatpush.msra.mxu0 0.0
    %260 = vmatpush.msra.mxu0 0.0
    %261 = vmatpush.msra.mxu0 0.0
    %262 = vmatpush.msra.mxu0 0.0
    %263 = vmatpush.msra.mxu0 %v123
    %264 = vmatmul.f32.gmra.mxu0 %v93
    %v265 = vpop.f32.mrf.mxu0
    %v266 = vadd.f32 %v77, %v265
    %267 = vmatmul.f32.gmra.mxu0 %v96
    %v268 = vpop.f32.mrf.mxu0
    %v269 = vadd.f32 %v77, %v268
    %270 = vmatmul.f32.gmra.mxu0 %v99
    %v271 = vpop.f32.mrf.mxu0
    %v272 = vadd.f32 %v77, %v271
    %273 = vmatmul.f32.gmra.mxu0 %v102
    %v274 = vpop.f32.mrf.mxu0
    %v275 = vadd.f32 %v77, %v274
    %276 = vmatmul.f32.gmra.mxu0 %v105
    %v277 = vpop.f32.mrf.mxu0
    %v278 = vadd.f32 %v77, %v277
    %279 = vmatmul.f32.gmra.mxu0 %v108
    %v280 = vpop.f32.mrf.mxu0
    %v281 = vadd.f32 %v77, %v280
    %282 = vmatmul.f32.gmra.mxu0 %v111
    %v283 = vpop.f32.mrf.mxu0
    %v284 = vadd.f32 %v77, %v283
    %285 = vmatmul.f32.gmra.mxu0 %v114
    %v286 = vpop.f32.mrf.mxu0
    %v287 = vadd.f32 %v77, %v286
    %288 = vdwg.mxu0
    %289 = vst [vmem:[#allocation4] sm:$0xff] %v143
    %290 = vst [vmem:[#allocation4 + $0x8] sm:$0xff] %v184
    %291 = vst [vmem:[#allocation4 + $0x10] sm:$0xff] %v225
    %292 = vst [vmem:[#allocation4 + $0x18] sm:$0xff] %v266
    %293 = vst [vmem:[#allocation4 + $0x20] sm:$0xff] %v146
    %294 = vst [vmem:[#allocation4 + $0x28] sm:$0xff] %v187
    %295 = vst [vmem:[#allocation4 + $0x30] sm:$0xff] %v228
    %296 = vst [vmem:[#allocation4 + $0x38] sm:$0xff] %v269
    %297 = vst [vmem:[#allocation4 + $0x40] sm:$0xff] %v149
    %298 = vst [vmem:[#allocation4 + $0x48] sm:$0xff] %v190
    %299 = vst [vmem:[#allocation4 + $0x50] sm:$0xff] %v231
    %300 = vst [vmem:[#allocation4 + $0x58] sm:$0xff] %v272
    %301 = vst [vmem:[#allocation4 + $0x60] sm:$0xff] %v152
    %302 = vst [vmem:[#allocation4 + $0x68] sm:$0xff] %v193
    %303 = vst [vmem:[#allocation4 + $0x70] sm:$0xff] %v234
    %304 = vst [vmem:[#allocation4 + $0x78] sm:$0xff] %v275
    %305 = vst [vmem:[#allocation4 + $0x80] sm:$0xff] %v155
    %306 = vst [vmem:[#allocation4 + $0x88] sm:$0xff] %v196
    %307 = vst [vmem:[#allocation4 + $0x90] sm:$0xff] %v237
    %308 = vst [vmem:[#allocation4 + $0x98] sm:$0xff] %v278
    %309 = vst [vmem:[#allocation4 + $0xa0] sm:$0xff] %v158
    %310 = vst [vmem:[#allocation4 + $0xa8] sm:$0xff] %v199
    %311 = vst [vmem:[#allocation4 + $0xb0] sm:$0xff] %v240
    %312 = vst [vmem:[#allocation4 + $0xb8] sm:$0xff] %v281
    %313 = vst [vmem:[#allocation4 + $0xc0] sm:$0xff] %v161
    %314 = vst [vmem:[#allocation4 + $0xc8] sm:$0xff] %v202
    %315 = vst [vmem:[#allocation4 + $0xd0] sm:$0xff] %v243
    %316 = vst [vmem:[#allocation4 + $0xd8] sm:$0xff] %v284
    %317 = vst [vmem:[#allocation4 + $0xe0] sm:$0xff] %v164
    %318 = vst [vmem:[#allocation4 + $0xe8] sm:$0xff] %v205
    %319 = vst [vmem:[#allocation4 + $0xf0] sm:$0xff] %v246
    %320 = vst [vmem:[#allocation4 + $0xf8] sm:$0xff] %v287
    %s321 = smul.u32 0, 4
    %s322 = smul.addr %s321, 8
    %s323 = scalar_lea.vmem [#allocation4], %s322
    %v324 = vld [vmem:[%s323] sm:$0xff]
    %v325 = vld [vmem:[%s323 + $0x8] sm:$0xff]
    %v326 = vld [vmem:[%s323 + $0x10] sm:$0xff]
    %v327 = vld [vmem:[%s323 + $0x18] sm:$0xff]
    %v328 = vld [vmem:[#allocation2] sm:$0xff]
    %v329 = vld [vmem:[#allocation5] sm:$0xff]
    %v330 = vld [vmem:[#allocation5 + $0x8] sm:$0xff]
    %v331 = vld [vmem:[#allocation5 + $0x10] sm:$0xff]
    %v332 = vld [vmem:[#allocation5 + $0x18] sm:$0xff]
    %v333 = vld [vmem:[#allocation5 + $0x20] sm:$0xff]
    %v334 = vld [vmem:[#allocation5 + $0x28] sm:$0xff]
    %v335 = vld [vmem:[#allocation5 + $0x30] sm:$0xff]
    %v336 = vld [vmem:[#allocation5 + $0x38] sm:$0xff]
    %v337 = vld [vmem:[#allocation5 + $0x40] sm:$0xff]
    %v338 = vld [vmem:[#allocation5 + $0x48] sm:$0xff]
    %v339 = vld [vmem:[#allocation5 + $0x50] sm:$0xff]
    %v340 = vld [vmem:[#allocation5 + $0x58] sm:$0xff]
    %v341 = vld [vmem:[#allocation5 + $0x60] sm:$0xff]
    %v342 = vld [vmem:[#allocation5 + $0x68] sm:$0xff]
    %v343 = vld [vmem:[#allocation5 + $0x70] sm:$0xff]
    %v344 = vld [vmem:[#allocation5 + $0x78] sm:$0xff]
    %v345 = vld [vmem:[#allocation5 + $0x80] sm:$0xff]
    %v346 = vld [vmem:[#allocation5 + $0x88] sm:$0xff]
    %v347 = vld [vmem:[#allocation5 + $0x90] sm:$0xff]
    %v348 = vld [vmem:[#allocation5 + $0x98] sm:$0xff]
    %v349 = vld [vmem:[#allocation5 + $0xa0] sm:$0xff]
    %v350 = vld [vmem:[#allocation5 + $0xa8] sm:$0xff]
    %v351 = vld [vmem:[#allocation5 + $0xb0] sm:$0xff]
    %v352 = vld [vmem:[#allocation5 + $0xb8] sm:$0xff]
    %v353 = vld [vmem:[#allocation5 + $0xc0] sm:$0xff]
    %v354 = vld [vmem:[#allocation5 + $0xc8] sm:$0xff]
    %v355 = vld [vmem:[#allocation5 + $0xd0] sm:$0xff]
    %v356 = vld [vmem:[#allocation5 + $0xd8] sm:$0xff]
    %v357 = vld [vmem:[#allocation5 + $0xe0] sm:$0xff]
    %v358 = vld [vmem:[#allocation5 + $0xe8] sm:$0xff]
    %v359 = vld [vmem:[#allocation5 + $0xf0] sm:$0xff]
    %v360 = vld [vmem:[#allocation5 + $0xf8] sm:$0xff]
    %v361 = vld [vmem:[#allocation5 + $0x100] sm:$0xff]
    %v362 = vld [vmem:[#allocation5 + $0x108] sm:$0xff]
    %v363 = vld [vmem:[#allocation5 + $0x110] sm:$0xff]
    %v364 = vld [vmem:[#allocation5 + $0x118] sm:$0xff]
    %v365 = vld [vmem:[#allocation5 + $0x120] sm:$0xff]
    %v366 = vld [vmem:[#allocation5 + $0x128] sm:$0xff]
    %v367 = vld [vmem:[#allocation5 + $0x130] sm:$0xff]
    %v368 = vld [vmem:[#allocation5 + $0x138] sm:$0xff]
    %v369 = vld [vmem:[#allocation5 + $0x140] sm:$0xff]
    %v370 = vld [vmem:[#allocation5 + $0x148] sm:$0xff]
    %v371 = vld [vmem:[#allocation5 + $0x150] sm:$0xff]
    %v372 = vld [vmem:[#allocation5 + $0x158] sm:$0xff]
    %v373 = vld [vmem:[#allocation5 + $0x160] sm:$0xff]
    %v374 = vld [vmem:[#allocation5 + $0x168] sm:$0xff]
    %v375 = vld [vmem:[#allocation5 + $0x170] sm:$0xff]
    %v376 = vld [vmem:[#allocation5 + $0x178] sm:$0xff]
    %v377 = vld [vmem:[#allocation5 + $0x180] sm:$0xff]
    %v378 = vld [vmem:[#allocation5 + $0x188] sm:$0xff]
    %v379 = vld [vmem:[#allocation5 + $0x190] sm:$0xff]
    %v380 = vld [vmem:[#allocation5 + $0x198] sm:$0xff]
    %v381 = vld [vmem:[#allocation5 + $0x1a0] sm:$0xff]
    %v382 = vld [vmem:[#allocation5 + $0x1a8] sm:$0xff]
    %v383 = vld [vmem:[#allocation5 + $0x1b0] sm:$0xff]
    %v384 = vld [vmem:[#allocation5 + $0x1b8] sm:$0xff]
    %v385 = vld [vmem:[#allocation5 + $0x1c0] sm:$0xff]
    %v386 = vld [vmem:[#allocation5 + $0x1c8] sm:$0xff]
    %v387 = vld [vmem:[#allocation5 + $0x1d0] sm:$0xff]
    %v388 = vld [vmem:[#allocation5 + $0x1d8] sm:$0xff]
    %v389 = vld [vmem:[#allocation5 + $0x1e0] sm:$0xff]
    %v390 = vld [vmem:[#allocation5 + $0x1e8] sm:$0xff]
    %v391 = vld [vmem:[#allocation5 + $0x1f0] sm:$0xff]
    %v392 = vld [vmem:[#allocation5 + $0x1f8] sm:$0xff]
    %393 = vmatpush.msra.mxu0 %v389
    %394 = vmatpush.msra.mxu0 %v385
    %395 = vmatpush.msra.mxu0 %v381
    %396 = vmatpush.msra.mxu0 %v377
    %397 = vmatpush.msra.mxu0 %v373
    %398 = vmatpush.msra.mxu0 %v369
    %399 = vmatpush.msra.mxu0 %v365
    %400 = vmatpush.msra.mxu0 %v361
    %401 = vmatpush.msra.mxu0 %v357
    %402 = vmatpush.msra.mxu0 %v353
    %403 = vmatpush.msra.mxu0 %v349
    %404 = vmatpush.msra.mxu0 %v345
    %405 = vmatpush.msra.mxu0 %v341
    %406 = vmatpush.msra.mxu0 %v337
    %407 = vmatpush.msra.mxu0 %v333
    %408 = vmatpush.msra.mxu0 %v329
    %409 = vmatmul.f32.gmra.mxu0 %v328
    %v410 = vpop.f32.mrf.mxu0
    %v411 = vadd.f32 0.0, %v410
    %412 = vdwg.mxu0
    %413 = vmatpush.msra.mxu0 %v390
    %414 = vmatpush.msra.mxu0 %v386
    %415 = vmatpush.msra.mxu0 %v382
    %416 = vmatpush.msra.mxu0 %v378
    %417 = vmatpush.msra.mxu0 %v374
    %418 = vmatpush.msra.mxu0 %v370
    %419 = vmatpush.msra.mxu0 %v366
    %420 = vmatpush.msra.mxu0 %v362
    %421 = vmatpush.msra.mxu0 %v358
    %422 = vmatpush.msra.mxu0 %v354
    %423 = vmatpush.msra.mxu0 %v350
    %424 = vmatpush.msra.mxu0 %v346
    %425 = vmatpush.msra.mxu0 %v342
    %426 = vmatpush.msra.mxu0 %v338
    %427 = vmatpush.msra.mxu0 %v334
    %428 = vmatpush.msra.mxu0 %v330
    %429 = vmatmul.f32.gmra.mxu0 %v328
    %v430 = vpop.f32.mrf.mxu0
    %v431 = vadd.f32 0.0, %v430
    %432 = vdwg.mxu0
    %433 = vmatpush.msra.mxu0 %v391
    %434 = vmatpush.msra.mxu0 %v387
    %435 = vmatpush.msra.mxu0 %v383
    %436 = vmatpush.msra.mxu0 %v379
    %437 = vmatpush.msra.mxu0 %v375
    %438 = vmatpush.msra.mxu0 %v371
    %439 = vmatpush.msra.mxu0 %v367
    %440 = vmatpush.msra.mxu0 %v363
    %441 = vmatpush.msra.mxu0 %v359
    %442 = vmatpush.msra.mxu0 %v355
    %443 = vmatpush.msra.mxu0 %v351
    %444 = vmatpush.msra.mxu0 %v347
    %445 = vmatpush.msra.mxu0 %v343
    %446 = vmatpush.msra.mxu0 %v339
    %447 = vmatpush.msra.mxu0 %v335
    %448 = vmatpush.msra.mxu0 %v331
    %449 = vmatmul.f32.gmra.mxu0 %v328
    %v450 = vpop.f32.mrf.mxu0
    %v451 = vadd.f32 0.0, %v450
    %452 = vdwg.mxu0
    %453 = vmatpush.msra.mxu0 %v392
    %454 = vmatpush.msra.mxu0 %v388
    %455 = vmatpush.msra.mxu0 %v384
    %456 = vmatpush.msra.mxu0 %v380
    %457 = vmatpush.msra.mxu0 %v376
    %458 = vmatpush.msra.mxu0 %v372
    %459 = vmatpush.msra.mxu0 %v368
    %460 = vmatpush.msra.mxu0 %v364
    %461 = vmatpush.msra.mxu0 %v360
    %462 = vmatpush.msra.mxu0 %v356
    %463 = vmatpush.msra.mxu0 %v352
    %464 = vmatpush.msra.mxu0 %v348
    %465 = vmatpush.msra.mxu0 %v344
    %466 = vmatpush.msra.mxu0 %v340
    %467 = vmatpush.msra.mxu0 %v336
    %468 = vmatpush.msra.mxu0 %v332
    %469 = vmatmul.f32.gmra.mxu0 %v328
    %v470 = vpop.f32.mrf.mxu0
    %v471 = vadd.f32 0.0, %v470
    %472 = vdwg.mxu0
    %v473 = vadd.f32 %v324, %v411
    %v474 = vadd.f32 %v325, %v431
    %v475 = vadd.f32 %v326, %v451
    %v476 = vadd.f32 %v327, %v471
    %v477 = vmul.f32 %v473, 0.5
    %v478 = vtanh.pop %v477
    %v479 = vmul.f32 %v478, 0.5
    %v480 = vadd.f32 %v479, 0.5
    %v481 = vmul.f32 %v474, 0.5
    %v482 = vtanh.pop %v481
    %v483 = vmul.f32 %v482, 0.5
    %v484 = vadd.f32 %v483, 0.5
    %v485 = vtanh.pop %v475
    %v486 = vmul.f32 %v476, 0.5
    %v487 = vtanh.pop %v486
    %v488 = vmul.f32 %v487, 0.5
    %v489 = vadd.f32 %v488, 0.5
    %v490 = vld [vmem:[#allocation3] sm:$0xff]
    %v491 = vmul.f32 %v484, %v490
    %v492 = vmul.f32 %v480, %v485
    %v493 = vadd.f32 %v491, %v492
    %494 = vst [vmem:[#allocation3] sm:$0xff] %v493
    %v495 = vtanh.pop %v493
    %v496 = vmul.f32 %v489, %v495
    %497 = vst [vmem:[#allocation2] sm:$0xff] %v496
    %s498 = smul.u32 1, 4
    %s499 = smul.addr %s498, 8
    %s500 = scalar_lea.vmem [#allocation4], %s499
    %v501 = vld [vmem:[%s500] sm:$0xff]
    %v502 = vld [vmem:[%s500 + $0x8] sm:$0xff]
    %v503 = vld [vmem:[%s500 + $0x10] sm:$0xff]
    %v504 = vld [vmem:[%s500 + $0x18] sm:$0xff]
    %v505 = vld [vmem:[#allocation2] sm:$0xff]
    %v506 = vld [vmem:[#allocation5] sm:$0xff]
    %v507 = vld [vmem:[#allocation5 + $0x8] sm:$0xff]
    %v508 = vld [vmem:[#allocation5 + $0x10] sm:$0xff]
    %v509 = vld [vmem:[#allocation5 + $0x18] sm:$0xff]
    %v510 = vld [vmem:[#allocation5 + $0x20] sm:$0xff]
    %v511 = vld [vmem:[#allocation5 + $0x28] sm:$0xff]
    %v512 = vld [vmem:[#allocation5 + $0x30] sm:$0xff]
    %v513 = vld [vmem:[#allocation5 + $0x38] sm:$0xff]
    %v514 = vld [vmem:[#allocation5 + $0x40] sm:$0xff]
    %v515 = vld [vmem:[#allocation5 + $0x48] sm:$0xff]
    %v516 = vld [vmem:[#allocation5 + $0x50] sm:$0xff]
    %v517 = vld [vmem:[#allocation5 + $0x58] sm:$0xff]
    %v518 = vld [vmem:[#allocation5 + $0x60] sm:$0xff]
    %v519 = vld [vmem:[#allocation5 + $0x68] sm:$0xff]
    %v520 = vld [vmem:[#allocation5 + $0x70] sm:$0xff]
    %v521 = vld [vmem:[#allocation5 + $0x78] sm:$0xff]
    %v522 = vld [vmem:[#allocation5 + $0x80] sm:$0xff]
    %v523 = vld [vmem:[#allocation5 + $0x88] sm:$0xff]
    %v524 = vld [vmem:[#allocation5 + $0x90] sm:$0xff]
    %v525 = vld [vmem:[#allocation5 + $0x98] sm:$0xff]
    %v526 = vld [vmem:[#allocation5 + $0xa0] sm:$0xff]
    %v527 = vld [vmem:[#allocation5 + $0xa8] sm:$0xff]
    %v528 = vld [vmem:[#allocation5 + $0xb0] sm:$0xff]
    %v529 = vld [vmem:[#allocation5 + $0xb8] sm:$0xff]
    %v530 = vld [vmem:[#allocation5 + $0xc0] sm:$0xff]
    %v531 = vld [vmem:[#allocation5 + $0xc8] sm:$0xff]
    %v532 = vld [vmem:[#allocation5 + $0xd0] sm:$0xff]
    %v533 = vld [vmem:[#allocation5 + $0xd8] sm:$0xff]
    %v534 = vld [vmem:[#allocation5 + $0xe0] sm:$0xff]
    %v535 = vld [vmem:[#allocation5 + $0xe8] sm:$0xff]
    %v536 = vld [vmem:[#allocation5 + $0xf0] sm:$0xff]
    %v537 = vld [vmem:[#allocation5 + $0xf8] sm:$0xff]
    %v538 = vld [vmem:[#allocation5 + $0x100] sm:$0xff]
    %v539 = vld [vmem:[#allocation5 + $0x108] sm:$0xff]
    %v540 = vld [vmem:[#allocation5 + $0x110] sm:$0xff]
    %v541 = vld [vmem:[#allocation5 + $0x118] sm:$0xff]
    %v542 = vld [vmem:[#allocation5 + $0x120] sm:$0xff]
    %v543 = vld [vmem:[#allocation5 + $0x128] sm:$0xff]
    %v544 = vld [vmem:[#allocation5 + $0x130] sm:$0xff]
    %v545 = vld [vmem:[#allocation5 + $0x138] sm:$0xff]
    %v546 = vld [vmem:[#allocation5 + $0x140] sm:$0xff]
    %v547 = vld [vmem:[#allocation5 + $0x148] sm:$0xff]
    %v548 = vld [vmem:[#allocation5 + $0x150] sm:$0xff]
    %v549 = vld [vmem:[#allocation5 + $0x158] sm:$0xff]
    %v550 = vld [vmem:[#allocation5 + $0x160] sm:$0xff]
    %v551 = vld [vmem:[#allocation5 + $0x168] sm:$0xff]
    %v552 = vld [vmem:[#allocation5 + $0x170] sm:$0xff]
    %v553 = vld [vmem:[#allocation5 + $0x178] sm:$0xff]
    %v554 = vld [vmem:[#allocation5 + $0x180] sm:$0xff]
    %v555 = vld [vmem:[#allocation5 + $0x188] sm:$0xff]
    %v556 = vld [vmem:[#allocation5 + $0x190] sm:$0xff]
    %v557 = vld [vmem:[#allocation5 + $0x198] sm:$0xff]
    %v558 = vld [vmem:[#allocation5 + $0x1a0] sm:$0xff]
    %v559 = vld [vmem:[#allocation5 + $0x1a8] sm:$0xff]
    %v560 = vld [vmem:[#allocation5 + $0x1b0] sm:$0xff]
    %v561 = vld [vmem:[#allocation5 + $0x1b8] sm:$0xff]
    %v562 = vld [vmem:[#allocation5 + $0x1c0] sm:$0xff]
    %v563 = vld [vmem:[#allocation5 + $0x1c8] sm:$0xff]
    %v564 = vld [vmem:[#allocation5 + $0x1d0] sm:$0xff]
    %v565 = vld [vmem:[#allocation5 + $0x1d8] sm:$0xff]
    %v566 = vld [vmem:[#allocation5 + $0x1e0] sm:$0xff]
    %v567 = vld [vmem:[#allocation5 + $0x1e8] sm:$0xff]
    %v568 = vld [vmem:[#allocation5 + $0x1f0] sm:$0xff]
    %v569 = vld [vmem:[#allocation5 + $0x1f8] sm:$0xff]
    %570 = vmatpush.msra.mxu0 %v566
    %571 = vmatpush.msra.mxu0 %v562
    %572 = vmatpush.msra.mxu0 %v558
    %573 = vmatpush.msra.mxu0 %v554
    %574 = vmatpush.msra.mxu0 %v550
    %575 = vmatpush.msra.mxu0 %v546
    %576 = vmatpush.msra.mxu0 %v542
    %577 = vmatpush.msra.mxu0 %v538
    %578 = vmatpush.msra.mxu0 %v534
    %579 = vmatpush.msra.mxu0 %v530
    %580 = vmatpush.msra.mxu0 %v526
    %581 = vmatpush.msra.mxu0 %v522
    %582 = vmatpush.msra.mxu0 %v518
    %583 = vmatpush.msra.mxu0 %v514
    %584 = vmatpush.msra.mxu0 %v510
    %585 = vmatpush.msra.mxu0 %v506
    %586 = vmatmul.f32.gmra.mxu0 %v505
    %v587 = vpop.f32.mrf.mxu0
    %v588 = vadd.f32 0.0, %v587
    %589 = vdwg.mxu0
    %590 = vmatpush.msra.mxu0 %v567
    %591 = vmatpush.msra.mxu0 %v563
    %592 = vmatpush.msra.mxu0 %v559
    %593 = vmatpush.msra.mxu0 %v555
    %594 = vmatpush.msra.mxu0 %v551
    %595 = vmatpush.msra.mxu0 %v547
    %596 = vmatpush.msra.mxu0 %v543
    %597 = vmatpush.msra.mxu0 %v539
    %598 = vmatpush.msra.mxu0 %v535
    %599 = vmatpush.msra.mxu0 %v531
    %600 = vmatpush.msra.mxu0 %v527
    %601 = vmatpush.msra.mxu0 %v523
    %602 = vmatpush.msra.mxu0 %v519
    %603 = vmatpush.msra.mxu0 %v515
    %604 = vmatpush.msra.mxu0 %v511
    %605 = vmatpush.msra.mxu0 %v507
    %606 = vmatmul.f32.gmra.mxu0 %v505
    %v607 = vpop.f32.mrf.mxu0
    %v608 = vadd.f32 0.0, %v607
    %609 = vdwg.mxu0
    %610 = vmatpush.msra.mxu0 %v568
    %611 = vmatpush.msra.mxu0 %v564
    %612 = vmatpush.msra.mxu0 %v560
    %613 = vmatpush.msra.mxu0 %v556
    %614 = vmatpush.msra.mxu0 %v552
    %615 = vmatpush.msra.mxu0 %v548
    %616 = vmatpush.msra.mxu0 %v544
    %617 = vmatpush.msra.mxu0 %v540
    %618 = vmatpush.msra.mxu0 %v536
    %619 = vmatpush.msra.mxu0 %v532
    %620 = vmatpush.msra.mxu0 %v528
    %621 = vmatpush.msra.mxu0 %v524
    %622 = vmatpush.msra.mxu0 %v520
    %623 = vmatpush.msra.mxu0 %v516
    %624 = vmatpush.msra.mxu0 %v512
    %625 = vmatpush.msra.mxu0 %v508
    %626 = vmatmul.f32.gmra.mxu0 %v505
    %v627 = vpop.f32.mrf.mxu0
    %v628 = vadd.f32 0.0, %v627
    %629 = vdwg.mxu0
    %630 = vmatpush.msra.mxu0 %v569
    %631 = vmatpush.msra.mxu0 %v565
    %632 = vmatpush.msra.mxu0 %v561
    %633 = vmatpush.msra.mxu0 %v557
    %634 = vmatpush.msra.mxu0 %v553
    %635 = vmatpush.msra.mxu0 %v549
    %636 = vmatpush.msra.mxu0 %v545
    %637 = vmatpush.msra.mxu0 %v541
    %638 = vmatpush.msra.mxu0 %v537
    %639 = vmatpush.msra.mxu0 %v533
    %640 = vmatpush.msra.mxu0 %v529
    %641 = vmatpush.msra.mxu0 %v525
    %642 = vmatpush.msra.mxu0 %v521
    %643 = vmatpush.msra.mxu0 %v517
    %644 = vmatpush.msra.mxu0 %v513
    %645 = vmatpush.msra.mxu0 %v509
    %646 = vmatmul.f32.gmra.mxu0 %v505
    %v647 = vpop.f32.mrf.mxu0
    %v648 = vadd.f32 0.0, %v647
    %649 = vdwg.mxu0
    %v650 = vadd.f32 %v501, %v588
    %v651 = vadd.f32 %v502, %v608
    %v652 = vadd.f32 %v503, %v628
    %v653 = vadd.f32 %v504, %v648
    %v654 = vmul.f32 %v650, 0.5
    %v655 = vtanh.pop %v654
    %v656 = vmul.f32 %v655, 0.5
    %v657 = vadd.f32 %v656, 0.5
    %v658 = vmul.f32 %v651, 0.5
    %v659 = vtanh.pop %v658
    %v660 = vmul.f32 %v659, 0.5
    %v661 = vadd.f32 %v660, 0.5
    %v662 = vtanh.pop %v652
    %v663 = vmul.f32 %v653, 0.5
    %v664 = vtanh.pop %v663
    %v665 = vmul.f32 %v664, 0.5
    %v666 = vadd.f32 %v665, 0.5
    %v667 = vld [vmem:[#allocation3] sm:$0xff]
    %v668 = vmul.f32 %v661, %v667
    %v669 = vmul.f32 %v657, %v662
    %v670 = vadd.f32 %v668, %v669
    %671 = vst [vmem:[#allocation3] sm:$0xff] %v670
    %v672 = vtanh.pop %v670
    %v673 = vmul.f32 %v666, %v672
    %674 = vst [vmem:[#allocation2] sm:$0xff] %v673
    %s675 = smul.u32 2, 4
    %s676 = smul.addr %s675, 8
    %s677 = scalar_lea.vmem [#allocation4], %s676
    %v678 = vld [vmem:[%s677] sm:$0xff]
    %v679 = vld [vmem:[%s677 + $0x8] sm:$0xff]
    %v680 = vld [vmem:[%s677 + $0x10] sm:$0xff]
    %v681 = vld [vmem:[%s677 + $0x18] sm:$0xff]
    %v682 = vld [vmem:[#allocation2] sm:$0xff]
    %v683 = vld [vmem:[#allocation5] sm:$0xff]
    %v684 = vld [vmem:[#allocation5 + $0x8] sm:$0xff]
    %v685 = vld [vmem:[#allocation5 + $0x10] sm:$0xff]
    %v686 = vld [vmem:[#allocation5 + $0x18] sm:$0xff]
    %v687 = vld [vmem:[#allocation5 + $0x20] sm:$0xff]
    %v688 = vld [vmem:[#allocation5 + $0x28] sm:$0xff]
    %v689 = vld [vmem:[#allocation5 + $0x30] sm:$0xff]
    %v690 = vld [vmem:[#allocation5 + $0x38] sm:$0xff]
    %v691 = vld [vmem:[#allocation5 + $0x40] sm:$0xff]
    %v692 = vld [vmem:[#allocation5 + $0x48] sm:$0xff]
    %v693 = vld [vmem:[#allocation5 + $0x50] sm:$0xff]
    %v694 = vld [vmem:[#allocation5 + $0x58] sm:$0xff]
    %v695 = vld [vmem:[#allocation5 + $0x60] sm:$0xff]
    %v696 = vld [vmem:[#allocation5 + $0x68] sm:$0xff]
    %v697 = vld [vmem:[#allocation5 + $0x70] sm:$0xff]
    %v698 = vld [vmem:[#allocation5 + $0x78] sm:$0xff]
    %v699 = vld [vmem:[#allocation5 + $0x80] sm:$0xff]
    %v700 = vld [vmem:[#allocation5 + $0x88] sm:$0xff]
    %v701 = vld [vmem:[#allocation5 + $0x90] sm:$0xff]
    %v702 = vld [vmem:[#allocation5 + $0x98] sm:$0xff]
    %v703 = vld [vmem:[#allocation5 + $0xa0] sm:$0xff]
    %v704 = vld [vmem:[#allocation5 + $0xa8] sm:$0xff]
    %v705 = vld [vmem:[#allocation5 + $0xb0] sm:$0xff]
    %v706 = vld [vmem:[#allocation5 + $0xb8] sm:$0xff]
    %v707 = vld [vmem:[#allocation5 + $0xc0] sm:$0xff]
    %v708 = vld [vmem:[#allocation5 + $0xc8] sm:$0xff]
    %v709 = vld [vmem:[#allocation5 + $0xd0] sm:$0xff]
    %v710 = vld [vmem:[#allocation5 + $0xd8] sm:$0xff]
    %v711 = vld [vmem:[#allocation5 + $0xe0] sm:$0xff]
    %v712 = vld [vmem:[#allocation5 + $0xe8] sm:$0xff]
    %v713 = vld [vmem:[#allocation5 + $0xf0] sm:$0xff]
    %v714 = vld [vmem:[#allocation5 + $0xf8] sm:$0xff]
    %v715 = vld [vmem:[#allocation5 + $0x100] sm:$0xff]
    %v716 = vld [vmem:[#allocation5 + $0x108] sm:$0xff]
    %v717 = vld [vmem:[#allocation5 + $0x110] sm:$0xff]
    %v718 = vld [vmem:[#allocation5 + $0x118] sm:$0xff]
    %v719 = vld [vmem:[#allocation5 + $0x120] sm:$0xff]
    %v720 = vld [vmem:[#allocation5 + $0x128] sm:$0xff]
    %v721 = vld [vmem:[#allocation5 + $0x130] sm:$0xff]
    %v722 = vld [vmem:[#allocation5 + $0x138] sm:$0xff]
    %v723 = vld [vmem:[#allocation5 + $0x140] sm:$0xff]
    %v724 = vld [vmem:[#allocation5 + $0x148] sm:$0xff]
    %v725 = vld [vmem:[#allocation5 + $0x150] sm:$0xff]
    %v726 = vld [vmem:[#allocation5 + $0x158] sm:$0xff]
    %v727 = vld [vmem:[#allocation5 + $0x160] sm:$0xff]
    %v728 = vld [vmem:[#allocation5 + $0x168] sm:$0xff]
    %v729 = vld [vmem:[#allocation5 + $0x170] sm:$0xff]
    %v730 = vld [vmem:[#allocation5 + $0x178] sm:$0xff]
    %v731 = vld [vmem:[#allocation5 + $0x180] sm:$0xff]
    %v732 = vld [vmem:[#allocation5 + $0x188] sm:$0xff]
    %v733 = vld [vmem:[#allocation5 + $0x190] sm:$0xff]
    %v734 = vld [vmem:[#allocation5 + $0x198] sm:$0xff]
    %v735 = vld [vmem:[#allocation5 + $0x1a0] sm:$0xff]
    %v736 = vld [vmem:[#allocation5 + $0x1a8] sm:$0xff]
    %v737 = vld [vmem:[#allocation5 + $0x1b0] sm:$0xff]
    %v738 = vld [vmem:[#allocation5 + $0x1b8] sm:$0xff]
    %v739 = vld [vmem:[#allocation5 + $0x1c0] sm:$0xff]
    %v740 = vld [vmem:[#allocation5 + $0x1c8] sm:$0xff]
    %v741 = vld [vmem:[#allocation5 + $0x1d0] sm:$0xff]
    %v742 = vld [vmem:[#allocation5 + $0x1d8] sm:$0xff]
    %v743 = vld [vmem:[#allocation5 + $0x1e0] sm:$0xff]
    %v744 = vld [vmem:[#allocation5 + $0x1e8] sm:$0xff]
    %v745 = vld [vmem:[#allocation5 + $0x1f0] sm:$0xff]
    %v746 = vld [vmem:[#allocation5 + $0x1f8] sm:$0xff]
    %747 = vmatpush.msra.mxu0 %v743
    %748 = vmatpush.msra.mxu0 %v739
    %749 = vmatpush.msra.mxu0 %v735
    %750 = vmatpush.msra.mxu0 %v731
    %751 = vmatpush.msra.mxu0 %v727
    %752 = vmatpush.msra.mxu0 %v723
    %753 = vmatpush.msra.mxu0 %v719
    %754 = vmatpush.msra.mxu0 %v715
    %755 = vmatpush.msra.mxu0 %v711
    %756 = vmatpush.msra.mxu0 %v707
    %757 = vmatpush.msra.mxu0 %v703
    %758 = vmatpush.msra.mxu0 %v699
    %759 = vmatpush.msra.mxu0 %v695
    %760 = vmatpush.msra.mxu0 %v691
    %761 = vmatpush.msra.mxu0 %v687
    %762 = vmatpush.msra.mxu0 %v683
    %763 = vmatmul.f32.gmra.mxu0 %v682
    %v764 = vpop.f32.mrf.mxu0
    %v765 = vadd.f32 0.0, %v764
    %766 = vdwg.mxu0
    %767 = vmatpush.msra.mxu0 %v744
    %768 = vmatpush.msra.mxu0 %v740
    %769 = vmatpush.msra.mxu0 %v736
    %770 = vmatpush.msra.mxu0 %v732
    %771 = vmatpush.msra.mxu0 %v728
    %772 = vmatpush.msra.mxu0 %v724
    %773 = vmatpush.msra.mxu0 %v720
    %774 = vmatpush.msra.mxu0 %v716
    %775 = vmatpush.msra.mxu0 %v712
    %776 = vmatpush.msra.mxu0 %v708
    %777 = vmatpush.msra.mxu0 %v704
    %778 = vmatpush.msra.mxu0 %v700
    %779 = vmatpush.msra.mxu0 %v696
    %780 = vmatpush.msra.mxu0 %v692
    %781 = vmatpush.msra.mxu0 %v688
    %782 = vmatpush.msra.mxu0 %v684
    %783 = vmatmul.f32.gmra.mxu0 %v682
    %v784 = vpop.f32.mrf.mxu0
    %v785 = vadd.f32 0.0, %v784
    %786 = vdwg.mxu0
    %787 = vmatpush.msra.mxu0 %v745
    %788 = vmatpush.msra.mxu0 %v741
    %789 = vmatpush.msra.mxu0 %v737
    %790 = vmatpush.msra.mxu0 %v733
    %791 = vmatpush.msra.mxu0 %v729
    %792 = vmatpush.msra.mxu0 %v725
    %793 = vmatpush.msra.mxu0 %v721
    %794 = vmatpush.msra.mxu0 %v717
    %795 = vmatpush.msra.mxu0 %v713
    %796 = vmatpush.msra.mxu0 %v709
    %797 = vmatpush.msra.mxu0 %v705
    %798 = vmatpush.msra.mxu0 %v701
    %799 = vmatpush.msra.mxu0 %v697
    %800 = vmatpush.msra.mxu0 %v693
    %801 = vmatpush.msra.mxu0 %v689
    %802 = vmatpush.msra.mxu0 %v685
    %803 = vmatmul.f32.gmra.mxu0 %v682
    %v804 = vpop.f32.mrf.mxu0
    %v805 = vadd.f32 0.0, %v804
    %806 = vdwg.mxu0
    %807 = vmatpush.msra.mxu0 %v746
    %808 = vmatpush.msra.mxu0 %v742
    %809 = vmatpush.msra.mxu0 %v738
    %810 = vmatpush.msra.mxu0 %v734
    %811 = vmatpush.msra.mxu0 %v730
    %812 = vmatpush.msra.mxu0 %v726
    %813 = vmatpush.msra.mxu0 %v722
    %814 = vmatpush.msra.mxu0 %v718
    %815 = vmatpush.msra.mxu0 %v714
    %816 = vmatpush.msra.mxu0 %v710
    %817 = vmatpush.msra.mxu0 %v706
    %818 = vmatpush.msra.mxu0 %v702
    %819 = vmatpush.msra.mxu0 %v698
    %820 = vmatpush.msra.mxu0 %v694
    %821 = vmatpush.msra.mxu0 %v690
    %822 = vmatpush.msra.mxu0 %v686
    %823 = vmatmul.f32.gmra.mxu0 %v682
    %v824 = vpop.f32.mrf.mxu0
    %v825 = vadd.f32 0.0, %v824
    %826 = vdwg.mxu0
    %v827 = vadd.f32 %v678, %v765
    %v828 = vadd.f32 %v679, %v785
    %v829 = vadd.f32 %v680, %v805
    %v830 = vadd.f32 %v681, %v825
    %v831 = vmul.f32 %v827, 0.5
    %v832 = vtanh.pop %v831
    %v833 = vmul.f32 %v832, 0.5
    %v834 = vadd.f32 %v833, 0.5
    %v835 = vmul.f32 %v828, 0.5
    %v836 = vtanh.pop %v835
    %v837 = vmul.f32 %v836, 0.5
    %v838 = vadd.f32 %v837, 0.5
    %v839 = vtanh.pop %v829
    %v840 = vmul.f32 %v830, 0.5
    %v841 = vtanh.pop %v840
    %v842 = vmul.f32 %v841, 0.5
    %v843 = vadd.f32 %v842, 0.5
    %v844 = vld [vmem:[#allocation3] sm:$0xff]
    %v845 = vmul.f32 %v838, %v844
    %v846 = vmul.f32 %v834, %v839
    %v847 = vadd.f32 %v845, %v846
    %848 = vst [vmem:[#allocation3] sm:$0xff] %v847
    %v849 = vtanh.pop %v847
    %v850 = vmul.f32 %v843, %v849
    %851 = vst [vmem:[#allocation2] sm:$0xff] %v850
    %s852 = smul.u32 3, 4
    %s853 = smul.addr %s852, 8
    %s854 = scalar_lea.vmem [#allocation4], %s853
    %v855 = vld [vmem:[%s854] sm:$0xff]
    %v856 = vld [vmem:[%s854 + $0x8] sm:$0xff]
    %v857 = vld [vmem:[%s854 + $0x10] sm:$0xff]
    %v858 = vld [vmem:[%s854 + $0x18] sm:$0xff]
    %v859 = vld [vmem:[#allocation2] sm:$0xff]
    %v860 = vld [vmem:[#allocation5] sm:$0xff]
    %v861 = vld [vmem:[#allocation5 + $0x8] sm:$0xff]
    %v862 = vld [vmem:[#allocation5 + $0x10] sm:$0xff]
    %v863 = vld [vmem:[#allocation5 + $0x18] sm:$0xff]
    %v864 = vld [vmem:[#allocation5 + $0x20] sm:$0xff]
    %v865 = vld [vmem:[#allocation5 + $0x28] sm:$0xff]
    %v866 = vld [vmem:[#allocation5 + $0x30] sm:$0xff]
    %v867 = vld [vmem:[#allocation5 + $0x38] sm:$0xff]
    %v868 = vld [vmem:[#allocation5 + $0x40] sm:$0xff]
    %v869 = vld [vmem:[#allocation5 + $0x48] sm:$0xff]
    %v870 = vld [vmem:[#allocation5 + $0x50] sm:$0xff]
    %v871 = vld [vmem:[#allocation5 + $0x58] sm:$0xff]
    %v872 = vld [vmem:[#allocation5 + $0x60] sm:$0xff]
    %v873 = vld [vmem:[#allocation5 + $0x68] sm:$0xff]
    %v874 = vld [vmem:[#allocation5 + $0x70] sm:$0xff]
    %v875 = vld [vmem:[#allocation5 + $0x78] sm:$0xff]
    %v876 = vld [vmem:[#allocation5 + $0x80] sm:$0xff]
    %v877 = vld [vmem:[#allocation5 + $0x88] sm:$0xff]
    %v878 = vld [vmem:[#allocation5 + $0x90] sm:$0xff]
    %v879 = vld [vmem:[#allocation5 + $0x98] sm:$0xff]
    %v880 = vld [vmem:[#allocation5 + $0xa0] sm:$0xff]
    %v881 = vld [vmem:[#allocation5 + $0xa8] sm:$0xff]
    %v882 = vld [vmem:[#allocation5 + $0xb0] sm:$0xff]
    %v883 = vld [vmem:[#allocation5 + $0xb8] sm:$0xff]
    %v884 = vld [vmem:[#allocation5 + $0xc0] sm:$0xff]
    %v885 = vld [vmem:[#allocation5 + $0xc8] sm:$0xff]
    %v886 = vld [vmem:[#allocation5 + $0xd0] sm:$0xff]
    %v887 = vld [vmem:[#allocation5 + $0xd8] sm:$0xff]
    %v888 = vld [vmem:[#allocation5 + $0xe0] sm:$0xff]
    %v889 = vld [vmem:[#allocation5 + $0xe8] sm:$0xff]
    %v890 = vld [vmem:[#allocation5 + $0xf0] sm:$0xff]
    %v891 = vld [vmem:[#allocation5 + $0xf8] sm:$0xff]
    %v892 = vld [vmem:[#allocation5 + $0x100] sm:$0xff]
    %v893 = vld [vmem:[#allocation5 + $0x108] sm:$0xff]
    %v894 = vld [vmem:[#allocation5 + $0x110] sm:$0xff]
    %v895 = vld [vmem:[#allocation5 + $0x118] sm:$0xff]
    %v896 = vld [vmem:[#allocation5 + $0x120] sm:$0xff]
    %v897 = vld [vmem:[#allocation5 + $0x128] sm:$0xff]
    %v898 = vld [vmem:[#allocation5 + $0x130] sm:$0xff]
    %v899 = vld [vmem:[#allocation5 + $0x138] sm:$0xff]
    %v900 = vld [vmem:[#allocation5 + $0x140] sm:$0xff]
    %v901 = vld [vmem:[#allocation5 + $0x148] sm:$0xff]
    %v902 = vld [vmem:[#allocation5 + $0x150] sm:$0xff]
    %v903 = vld [vmem:[#allocation5 + $0x158] sm:$0xff]
    %v904 = vld [vmem:[#allocation5 + $0x160] sm:$0xff]
    %v905 = vld [vmem:[#allocation5 + $0x168] sm:$0xff]
    %v906 = vld [vmem:[#allocation5 + $0x170] sm:$0xff]
    %v907 = vld [vmem:[#allocation5 + $0x178] sm:$0xff]
    %v908 = vld [vmem:[#allocation5 + $0x180] sm:$0xff]
    %v909 = vld [vmem:[#allocation5 + $0x188] sm:$0xff]
    %v910 = vld [vmem:[#allocation5 + $0x190] sm:$0xff]
    %v911 = vld [vmem:[#allocation5 + $0x198] sm:$0xff]
    %v912 = vld [vmem:[#allocation5 + $0x1a0] sm:$0xff]
    %v913 = vld [vmem:[#allocation5 + $0x1a8] sm:$0xff]
    %v914 = vld [vmem:[#allocation5 + $0x1b0] sm:$0xff]
    %v915 = vld [vmem:[#allocation5 + $0x1b8] sm:$0xff]
    %v916 = vld [vmem:[#allocation5 + $0x1c0] sm:$0xff]
    %v917 = vld [vmem:[#allocation5 + $0x1c8] sm:$0xff]
    %v918 = vld [vmem:[#allocation5 + $0x1d0] sm:$0xff]
    %v919 = vld [vmem:[#allocation5 + $0x1d8] sm:$0xff]
    %v920 = vld [vmem:[#allocation5 + $0x1e0] sm:$0xff]
    %v921 = vld [vmem:[#allocation5 + $0x1e8] sm:$0xff]
    %v922 = vld [vmem:[#allocation5 + $0x1f0] sm:$0xff]
    %v923 = vld [vmem:[#allocation5 + $0x1f8] sm:$0xff]
    %924 = vmatpush.msra.mxu0 %v920
    %925 = vmatpush.msra.mxu0 %v916
    %926 = vmatpush.msra.mxu0 %v912
    %927 = vmatpush.msra.mxu0 %v908
    %928 = vmatpush.msra.mxu0 %v904
    %929 = vmatpush.msra.mxu0 %v900
    %930 = vmatpush.msra.mxu0 %v896
    %931 = vmatpush.msra.mxu0 %v892
    %932 = vmatpush.msra.mxu0 %v888
    %933 = vmatpush.msra.mxu0 %v884
    %934 = vmatpush.msra.mxu0 %v880
    %935 = vmatpush.msra.mxu0 %v876
    %936 = vmatpush.msra.mxu0 %v872
    %937 = vmatpush.msra.mxu0 %v868
    %938 = vmatpush.msra.mxu0 %v864
    %939 = vmatpush.msra.mxu0 %v860
    %940 = vmatmul.f32.gmra.mxu0 %v859
    %v941 = vpop.f32.mrf.mxu0
    %v942 = vadd.f32 0.0, %v941
    %943 = vdwg.mxu0
    %944 = vmatpush.msra.mxu0 %v921
    %945 = vmatpush.msra.mxu0 %v917
    %946 = vmatpush.msra.mxu0 %v913
    %947 = vmatpush.msra.mxu0 %v909
    %948 = vmatpush.msra.mxu0 %v905
    %949 = vmatpush.msra.mxu0 %v901
    %950 = vmatpush.msra.mxu0 %v897
    %951 = vmatpush.msra.mxu0 %v893
    %952 = vmatpush.msra.mxu0 %v889
    %953 = vmatpush.msra.mxu0 %v885
    %954 = vmatpush.msra.mxu0 %v881
    %955 = vmatpush.msra.mxu0 %v877
    %956 = vmatpush.msra.mxu0 %v873
    %957 = vmatpush.msra.mxu0 %v869
    %958 = vmatpush.msra.mxu0 %v865
    %959 = vmatpush.msra.mxu0 %v861
    %960 = vmatmul.f32.gmra.mxu0 %v859
    %v961 = vpop.f32.mrf.mxu0
    %v962 = vadd.f32 0.0, %v961
    %963 = vdwg.mxu0
    %964 = vmatpush.msra.mxu0 %v922
    %965 = vmatpush.msra.mxu0 %v918
    %966 = vmatpush.msra.mxu0 %v914
    %967 = vmatpush.msra.mxu0 %v910
    %968 = vmatpush.msra.mxu0 %v906
    %969 = vmatpush.msra.mxu0 %v902
    %970 = vmatpush.msra.mxu0 %v898
    %971 = vmatpush.msra.mxu0 %v894
    %972 = vmatpush.msra.mxu0 %v890
    %973 = vmatpush.msra.mxu0 %v886
    %974 = vmatpush.msra.mxu0 %v882
    %975 = vmatpush.msra.mxu0 %v878
    %976 = vmatpush.msra.mxu0 %v874
    %977 = vmatpush.msra.mxu0 %v870
    %978 = vmatpush.msra.mxu0 %v866
    %979 = vmatpush.msra.mxu0 %v862
    %980 = vmatmul.f32.gmra.mxu0 %v859
    %v981 = vpop.f32.mrf.mxu0
    %v982 = vadd.f32 0.0, %v981
    %983 = vdwg.mxu0
    %984 = vmatpush.msra.mxu0 %v923
    %985 = vmatpush.msra.mxu0 %v919
    %986 = vmatpush.msra.mxu0 %v915
    %987 = vmatpush.msra.mxu0 %v911
    %988 = vmatpush.msra.mxu0 %v907
    %989 = vmatpush.msra.mxu0 %v903
    %990 = vmatpush.msra.mxu0 %v899
    %991 = vmatpush.msra.mxu0 %v895
    %992 = vmatpush.msra.mxu0 %v891
    %993 = vmatpush.msra.mxu0 %v887
    %994 = vmatpush.msra.mxu0 %v883
    %995 = vmatpush.msra.mxu0 %v879
    %996 = vmatpush.msra.mxu0 %v875
    %997 = vmatpush.msra.mxu0 %v871
    %998 = vmatpush.msra.mxu0 %v867
    %999 = vmatpush.msra.mxu0 %v863
    %1000 = vmatmul.f32.gmra.mxu0 %v859
    %v1001 = vpop.f32.mrf.mxu0
    %v1002 = vadd.f32 0.0, %v1001
    %1003 = vdwg.mxu0
    %v1004 = vadd.f32 %v855, %v942
    %v1005 = vadd.f32 %v856, %v962
    %v1006 = vadd.f32 %v857, %v982
    %v1007 = vadd.f32 %v858, %v1002
    %v1008 = vmul.f32 %v1004, 0.5
    %v1009 = vtanh.pop %v1008
    %v1010 = vmul.f32 %v1009, 0.5
    %v1011 = vadd.f32 %v1010, 0.5
    %v1012 = vmul.f32 %v1005, 0.5
    %v1013 = vtanh.pop %v1012
    %v1014 = vmul.f32 %v1013, 0.5
    %v1015 = vadd.f32 %v1014, 0.5
    %v1016 = vtanh.pop %v1006
    %v1017 = vmul.f32 %v1007, 0.5
    %v1018 = vtanh.pop %v1017
    %v1019 = vmul.f32 %v1018, 0.5
    %v1020 = vadd.f32 %v1019, 0.5
    %v1021 = vld [vmem:[#allocation3] sm:$0xff]
    %v1022 = vmul.f32 %v1015, %v1021
    %v1023 = vmul.f32 %v1011, %v1016
    %v1024 = vadd.f32 %v1022, %v1023
    %1025 = vst [vmem:[#allocation3] sm:$0xff] %v1024
    %v1026 = vtanh.pop %v1024
    %v1027 = vmul.f32 %v1020, %v1026
    %1028 = vst [vmem:[#allocation2] sm:$0xff] %v1027
    %s1029 = smul.u32 4, 4
    %s1030 = smul.addr %s1029, 8
    %s1031 = scalar_lea.vmem [#allocation4], %s1030
    %v1032 = vld [vmem:[%s1031] sm:$0xff]
    %v1033 = vld [vmem:[%s1031 + $0x8] sm:$0xff]
    %v1034 = vld [vmem:[%s1031 + $0x10] sm:$0xff]
    %v1035 = vld [vmem:[%s1031 + $0x18] sm:$0xff]
    %v1036 = vld [vmem:[#allocation2] sm:$0xff]
    %v1037 = vld [vmem:[#allocation5] sm:$0xff]
    %v1038 = vld [vmem:[#allocation5 + $0x8] sm:$0xff]
    %v1039 = vld [vmem:[#allocation5 + $0x10] sm:$0xff]
    %v1040 = vld [vmem:[#allocation5 + $0x18] sm:$0xff]
    %v1041 = vld [vmem:[#allocation5 + $0x20] sm:$0xff]
    %v1042 = vld [vmem:[#allocation5 + $0x28] sm:$0xff]
    %v1043 = vld [vmem:[#allocation5 + $0x30] sm:$0xff]
    %v1044 = vld [vmem:[#allocation5 + $0x38] sm:$0xff]
    %v1045 = vld [vmem:[#allocation5 + $0x40] sm:$0xff]
    %v1046 = vld [vmem:[#allocation5 + $0x48] sm:$0xff]
    %v1047 = vld [vmem:[#allocation5 + $0x50] sm:$0xff]
    %v1048 = vld [vmem:[#allocation5 + $0x58] sm:$0xff]
    %v1049 = vld [vmem:[#allocation5 + $0x60] sm:$0xff]
    %v1050 = vld [vmem:[#allocation5 + $0x68] sm:$0xff]
    %v1051 = vld [vmem:[#allocation5 + $0x70] sm:$0xff]
    %v1052 = vld [vmem:[#allocation5 + $0x78] sm:$0xff]
    %v1053 = vld [vmem:[#allocation5 + $0x80] sm:$0xff]
    %v1054 = vld [vmem:[#allocation5 + $0x88] sm:$0xff]
    %v1055 = vld [vmem:[#allocation5 + $0x90] sm:$0xff]
    %v1056 = vld [vmem:[#allocation5 + $0x98] sm:$0xff]
    %v1057 = vld [vmem:[#allocation5 + $0xa0] sm:$0xff]
    %v1058 = vld [vmem:[#allocation5 + $0xa8] sm:$0xff]
    %v1059 = vld [vmem:[#allocation5 + $0xb0] sm:$0xff]
    %v1060 = vld [vmem:[#allocation5 + $0xb8] sm:$0xff]
    %v1061 = vld [vmem:[#allocation5 + $0xc0] sm:$0xff]
    %v1062 = vld [vmem:[#allocation5 + $0xc8] sm:$0xff]
    %v1063 = vld [vmem:[#allocation5 + $0xd0] sm:$0xff]
    %v1064 = vld [vmem:[#allocation5 + $0xd8] sm:$0xff]
    %v1065 = vld [vmem:[#allocation5 + $0xe0] sm:$0xff]
    %v1066 = vld [vmem:[#allocation5 + $0xe8] sm:$0xff]
    %v1067 = vld [vmem:[#allocation5 + $0xf0] sm:$0xff]
    %v1068 = vld [vmem:[#allocation5 + $0xf8] sm:$0xff]
    %v1069 = vld [vmem:[#allocation5 + $0x100] sm:$0xff]
    %v1070 = vld [vmem:[#allocation5 + $0x108] sm:$0xff]
    %v1071 = vld [vmem:[#allocation5 + $0x110] sm:$0xff]
    %v1072 = vld [vmem:[#allocation5 + $0x118] sm:$0xff]
    %v1073 = vld [vmem:[#allocation5 + $0x120] sm:$0xff]
    %v1074 = vld [vmem:[#allocation5 + $0x128] sm:$0xff]
    %v1075 = vld [vmem:[#allocation5 + $0x130] sm:$0xff]
    %v1076 = vld [vmem:[#allocation5 + $0x138] sm:$0xff]
    %v1077 = vld [vmem:[#allocation5 + $0x140] sm:$0xff]
    %v1078 = vld [vmem:[#allocation5 + $0x148] sm:$0xff]
    %v1079 = vld [vmem:[#allocation5 + $0x150] sm:$0xff]
    %v1080 = vld [vmem:[#allocation5 + $0x158] sm:$0xff]
    %v1081 = vld [vmem:[#allocation5 + $0x160] sm:$0xff]
    %v1082 = vld [vmem:[#allocation5 + $0x168] sm:$0xff]
    %v1083 = vld [vmem:[#allocation5 + $0x170] sm:$0xff]
    %v1084 = vld [vmem:[#allocation5 + $0x178] sm:$0xff]
    %v1085 = vld [vmem:[#allocation5 + $0x180] sm:$0xff]
    %v1086 = vld [vmem:[#allocation5 + $0x188] sm:$0xff]
    %v1087 = vld [vmem:[#allocation5 + $0x190] sm:$0xff]
    %v1088 = vld [vmem:[#allocation5 + $0x198] sm:$0xff]
    %v1089 = vld [vmem:[#allocation5 + $0x1a0] sm:$0xff]
    %v1090 = vld [vmem:[#allocation5 + $0x1a8] sm:$0xff]
    %v1091 = vld [vmem:[#allocation5 + $0x1b0] sm:$0xff]
    %v1092 = vld [vmem:[#allocation5 + $0x1b8] sm:$0xff]
    %v1093 = vld [vmem:[#allocation5 + $0x1c0] sm:$0xff]
    %v1094 = vld [vmem:[#allocation5 + $0x1c8] sm:$0xff]
    %v1095 = vld [vmem:[#allocation5 + $0x1d0] sm:$0xff]
    %v1096 = vld [vmem:[#allocation5 + $0x1d8] sm:$0xff]
    %v1097 = vld [vmem:[#allocation5 + $0x1e0] sm:$0xff]
    %v1098 = vld [vmem:[#allocation5 + $0x1e8] sm:$0xff]
    %v1099 = vld [vmem:[#allocation5 + $0x1f0] sm:$0xff]
    %v1100 = vld [vmem:[#allocation5 + $0x1f8] sm:$0xff]
    %1101 = vmatpush.msra.mxu0 %v1097
    %1102 = vmatpush.msra.mxu0 %v1093
    %1103 = vmatpush.msra.mxu0 %v1089
    %1104 = vmatpush.msra.mxu0 %v1085
    %1105 = vmatpush.msra.mxu0 %v1081
    %1106 = vmatpush.msra.mxu0 %v1077
    %1107 = vmatpush.msra.mxu0 %v1073
    %1108 = vmatpush.msra.mxu0 %v1069
    %1109 = vmatpush.msra.mxu0 %v1065
    %1110 = vmatpush.msra.mxu0 %v1061
    %1111 = vmatpush.msra.mxu0 %v1057
    %1112 = vmatpush.msra.mxu0 %v1053
    %1113 = vmatpush.msra.mxu0 %v1049
    %1114 = vmatpush.msra.mxu0 %v1045
    %1115 = vmatpush.msra.mxu0 %v1041
    %1116 = vmatpush.msra.mxu0 %v1037
    %1117 = vmatmul.f32.gmra.mxu0 %v1036
    %v1118 = vpop.f32.mrf.mxu0
    %v1119 = vadd.f32 0.0, %v1118
    %1120 = vdwg.mxu0
    %1121 = vmatpush.msra.mxu0 %v1098
    %1122 = vmatpush.msra.mxu0 %v1094
    %1123 = vmatpush.msra.mxu0 %v1090
    %1124 = vmatpush.msra.mxu0 %v1086
    %1125 = vmatpush.msra.mxu0 %v1082
    %1126 = vmatpush.msra.mxu0 %v1078
    %1127 = vmatpush.msra.mxu0 %v1074
    %1128 = vmatpush.msra.mxu0 %v1070
    %1129 = vmatpush.msra.mxu0 %v1066
    %1130 = vmatpush.msra.mxu0 %v1062
    %1131 = vmatpush.msra.mxu0 %v1058
    %1132 = vmatpush.msra.mxu0 %v1054
    %1133 = vmatpush.msra.mxu0 %v1050
    %1134 = vmatpush.msra.mxu0 %v1046
    %1135 = vmatpush.msra.mxu0 %v1042
    %1136 = vmatpush.msra.mxu0 %v1038
    %1137 = vmatmul.f32.gmra.mxu0 %v1036
    %v1138 = vpop.f32.mrf.mxu0
    %v1139 = vadd.f32 0.0, %v1138
    %1140 = vdwg.mxu0
    %1141 = vmatpush.msra.mxu0 %v1099
    %1142 = vmatpush.msra.mxu0 %v1095
    %1143 = vmatpush.msra.mxu0 %v1091
    %1144 = vmatpush.msra.mxu0 %v1087
    %1145 = vmatpush.msra.mxu0 %v1083
    %1146 = vmatpush.msra.mxu0 %v1079
    %1147 = vmatpush.msra.mxu0 %v1075
    %1148 = vmatpush.msra.mxu0 %v1071
    %1149 = vmatpush.msra.mxu0 %v1067
    %1150 = vmatpush.msra.mxu0 %v1063
    %1151 = vmatpush.msra.mxu0 %v1059
    %1152 = vmatpush.msra.mxu0 %v1055
    %1153 = vmatpush.msra.mxu0 %v1051
    %1154 = vmatpush.msra.mxu0 %v1047
    %1155 = vmatpush.msra.mxu0 %v1043
    %1156 = vmatpush.msra.mxu0 %v1039
    %1157 = vmatmul.f32.gmra.mxu0 %v1036
    %v1158 = vpop.f32.mrf.mxu0
    %v1159 = vadd.f32 0.0, %v1158
    %1160 = vdwg.mxu0
    %1161 = vmatpush.msra.mxu0 %v1100
    %1162 = vmatpush.msra.mxu0 %v1096
    %1163 = vmatpush.msra.mxu0 %v1092
    %1164 = vmatpush.msra.mxu0 %v1088
    %1165 = vmatpush.msra.mxu0 %v1084
    %1166 = vmatpush.msra.mxu0 %v1080
    %1167 = vmatpush.msra.mxu0 %v1076
    %1168 = vmatpush.msra.mxu0 %v1072
    %1169 = vmatpush.msra.mxu0 %v1068
    %1170 = vmatpush.msra.mxu0 %v1064
    %1171 = vmatpush.msra.mxu0 %v1060
    %1172 = vmatpush.msra.mxu0 %v1056
    %1173 = vmatpush.msra.mxu0 %v1052
    %1174 = vmatpush.msra.mxu0 %v1048
    %1175 = vmatpush.msra.mxu0 %v1044
    %1176 = vmatpush.msra.mxu0 %v1040
    %1177 = vmatmul.f32.gmra.mxu0 %v1036
    %v1178 = vpop.f32.mrf.mxu0
    %v1179 = vadd.f32 0.0, %v1178
    %1180 = vdwg.mxu0
    %v1181 = vadd.f32 %v1032, %v1119
    %v1182 = vadd.f32 %v1033, %v1139
    %v1183 = vadd.f32 %v1034, %v1159
    %v1184 = vadd.f32 %v1035, %v1179
    %v1185 = vmul.f32 %v1181, 0.5
    %v1186 = vtanh.pop %v1185
    %v1187 = vmul.f32 %v1186, 0.5
    %v1188 = vadd.f32 %v1187, 0.5
    %v1189 = vmul.f32 %v1182, 0.5
    %v1190 = vtanh.pop %v1189
    %v1191 = vmul.f32 %v1190, 0.5
    %v1192 = vadd.f32 %v1191, 0.5
    %v1193 = vtanh.pop %v1183
    %v1194 = vmul.f32 %v1184, 0.5
    %v1195 = vtanh.pop %v1194
    %v1196 = vmul.f32 %v1195, 0.5
    %v1197 = vadd.f32 %v1196, 0.5
    %v1198 = vld [vmem:[#allocation3] sm:$0xff]
    %v1199 = vmul.f32 %v1192, %v1198
    %v1200 = vmul.f32 %v1188, %v1193
    %v1201 = vadd.f32 %v1199, %v1200
    %1202 = vst [vmem:[#allocation3] sm:$0xff] %v1201
    %v1203 = vtanh.pop %v1201
    %v1204 = vmul.f32 %v1197, %v1203
    %1205 = vst [vmem:[#allocation2] sm:$0xff] %v1204
    %s1206 = smul.u32 5, 4
    %s1207 = smul.addr %s1206, 8
    %s1208 = scalar_lea.vmem [#allocation4], %s1207
    %v1209 = vld [vmem:[%s1208] sm:$0xff]
    %v1210 = vld [vmem:[%s1208 + $0x8] sm:$0xff]
    %v1211 = vld [vmem:[%s1208 + $0x10] sm:$0xff]
    %v1212 = vld [vmem:[%s1208 + $0x18] sm:$0xff]
    %v1213 = vld [vmem:[#allocation2] sm:$0xff]
    %v1214 = vld [vmem:[#allocation5] sm:$0xff]
    %v1215 = vld [vmem:[#allocation5 + $0x8] sm:$0xff]
    %v1216 = vld [vmem:[#allocation5 + $0x10] sm:$0xff]
    %v1217 = vld [vmem:[#allocation5 + $0x18] sm:$0xff]
    %v1218 = vld [vmem:[#allocation5 + $0x20] sm:$0xff]
    %v1219 = vld [vmem:[#allocation5 + $0x28] sm:$0xff]
    %v1220 = vld [vmem:[#allocation5 + $0x30] sm:$0xff]
    %v1221 = vld [vmem:[#allocation5 + $0x38] sm:$0xff]
    %v1222 = vld [vmem:[#allocation5 + $0x40] sm:$0xff]
    %v1223 = vld [vmem:[#allocation5 + $0x48] sm:$0xff]
    %v1224 = vld [vmem:[#allocation5 + $0x50] sm:$0xff]
    %v1225 = vld [vmem:[#allocation5 + $0x58] sm:$0xff]
    %v1226 = vld [vmem:[#allocation5 + $0x60] sm:$0xff]
    %v1227 = vld [vmem:[#allocation5 + $0x68] sm:$0xff]
    %v1228 = vld [vmem:[#allocation5 + $0x70] sm:$0xff]
    %v1229 = vld [vmem:[#allocation5 + $0x78] sm:$0xff]
    %v1230 = vld [vmem:[#allocation5 + $0x80] sm:$0xff]
    %v1231 = vld [vmem:[#allocation5 + $0x88] sm:$0xff]
    %v1232 = vld [vmem:[#allocation5 + $0x90] sm:$0xff]
    %v1233 = vld [vmem:[#allocation5 + $0x98] sm:$0xff]
    %v1234 = vld [vmem:[#allocation5 + $0xa0] sm:$0xff]
    %v1235 = vld [vmem:[#allocation5 + $0xa8] sm:$0xff]
    %v1236 = vld [vmem:[#allocation5 + $0xb0] sm:$0xff]
    %v1237 = vld [vmem:[#allocation5 + $0xb8] sm:$0xff]
    %v1238 = vld [vmem:[#allocation5 + $0xc0] sm:$0xff]
    %v1239 = vld [vmem:[#allocation5 + $0xc8] sm:$0xff]
    %v1240 = vld [vmem:[#allocation5 + $0xd0] sm:$0xff]
    %v1241 = vld [vmem:[#allocation5 + $0xd8] sm:$0xff]
    %v1242 = vld [vmem:[#allocation5 + $0xe0] sm:$0xff]
    %v1243 = vld [vmem:[#allocation5 + $0xe8] sm:$0xff]
    %v1244 = vld [vmem:[#allocation5 + $0xf0] sm:$0xff]
    %v1245 = vld [vmem:[#allocation5 + $0xf8] sm:$0xff]
    %v1246 = vld [vmem:[#allocation5 + $0x100] sm:$0xff]
    %v1247 = vld [vmem:[#allocation5 + $0x108] sm:$0xff]
    %v1248 = vld [vmem:[#allocation5 + $0x110] sm:$0xff]
    %v1249 = vld [vmem:[#allocation5 + $0x118] sm:$0xff]
    %v1250 = vld [vmem:[#allocation5 + $0x120] sm:$0xff]
    %v1251 = vld [vmem:[#allocation5 + $0x128] sm:$0xff]
    %v1252 = vld [vmem:[#allocation5 + $0x130] sm:$0xff]
    %v1253 = vld [vmem:[#allocation5 + $0x138] sm:$0xff]
    %v1254 = vld [vmem:[#allocation5 + $0x140] sm:$0xff]
    %v1255 = vld [vmem:[#allocation5 + $0x148] sm:$0xff]
    %v1256 = vld [vmem:[#allocation5 + $0x150] sm:$0xff]
    %v1257 = vld [vmem:[#allocation5 + $0x158] sm:$0xff]
    %v1258 = vld [vmem:[#allocation5 + $0x160] sm:$0xff]
    %v1259 = vld [vmem:[#allocation5 + $0x168] sm:$0xff]
    %v1260 = vld [vmem:[#allocation5 + $0x170] sm:$0xff]
    %v1261 = vld [vmem:[#allocation5 + $0x178] sm:$0xff]
    %v1262 = vld [vmem:[#allocation5 + $0x180] sm:$0xff]
    %v1263 = vld [vmem:[#allocation5 + $0x188] sm:$0xff]
    %v1264 = vld [vmem:[#allocation5 + $0x190] sm:$0xff]
    %v1265 = vld [vmem:[#allocation5 + $0x198] sm:$0xff]
    %v1266 = vld [vmem:[#allocation5 + $0x1a0] sm:$0xff]
    %v1267 = vld [vmem:[#allocation5 + $0x1a8] sm:$0xff]
    %v1268 = vld [vmem:[#allocation5 + $0x1b0] sm:$0xff]
    %v1269 = vld [vmem:[#allocation5 + $0x1b8] sm:$0xff]
    %v1270 = vld [vmem:[#allocation5 + $0x1c0] sm:$0xff]
    %v1271 = vld [vmem:[#allocation5 + $0x1c8] sm:$0xff]
    %v1272 = vld [vmem:[#allocation5 + $0x1d0] sm:$0xff]
    %v1273 = vld [vmem:[#allocation5 + $0x1d8] sm:$0xff]
    %v1274 = vld [vmem:[#allocation5 + $0x1e0] sm:$0xff]
    %v1275 = vld [vmem:[#allocation5 + $0x1e8] sm:$0xff]
    %v1276 = vld [vmem:[#allocation5 + $0x1f0] sm:$0xff]
    %v1277 = vld [vmem:[#allocation5 + $0x1f8] sm:$0xff]
    %1278 = vmatpush.msra.mxu0 %v1274
    %1279 = vmatpush.msra.mxu0 %v1270
    %1280 = vmatpush.msra.mxu0 %v1266
    %1281 = vmatpush.msra.mxu0 %v1262
    %1282 = vmatpush.msra.mxu0 %v1258
    %1283 = vmatpush.msra.mxu0 %v1254
    %1284 = vmatpush.msra.mxu0 %v1250
    %1285 = vmatpush.msra.mxu0 %v1246
    %1286 = vmatpush.msra.mxu0 %v1242
    %1287 = vmatpush.msra.mxu0 %v1238
    %1288 = vmatpush.msra.mxu0 %v1234
    %1289 = vmatpush.msra.mxu0 %v1230
    %1290 = vmatpush.msra.mxu0 %v1226
    %1291 = vmatpush.msra.mxu0 %v1222
    %1292 = vmatpush.msra.mxu0 %v1218
    %1293 = vmatpush.msra.mxu0 %v1214
    %1294 = vmatmul.f32.gmra.mxu0 %v1213
    %v1295 = vpop.f32.mrf.mxu0
    %v1296 = vadd.f32 0.0, %v1295
    %1297 = vdwg.mxu0
    %1298 = vmatpush.msra.mxu0 %v1275
    %1299 = vmatpush.msra.mxu0 %v1271
    %1300 = vmatpush.msra.mxu0 %v1267
    %1301 = vmatpush.msra.mxu0 %v1263
    %1302 = vmatpush.msra.mxu0 %v1259
    %1303 = vmatpush.msra.mxu0 %v1255
    %1304 = vmatpush.msra.mxu0 %v1251
    %1305 = vmatpush.msra.mxu0 %v1247
    %1306 = vmatpush.msra.mxu0 %v1243
    %1307 = vmatpush.msra.mxu0 %v1239
    %1308 = vmatpush.msra.mxu0 %v1235
    %1309 = vmatpush.msra.mxu0 %v1231
    %1310 = vmatpush.msra.mxu0 %v1227
    %1311 = vmatpush.msra.mxu0 %v1223
    %1312 = vmatpush.msra.mxu0 %v1219
    %1313 = vmatpush.msra.mxu0 %v1215
    %1314 = vmatmul.f32.gmra.mxu0 %v1213
    %v1315 = vpop.f32.mrf.mxu0
    %v1316 = vadd.f32 0.0, %v1315
    %1317 = vdwg.mxu0
    %1318 = vmatpush.msra.mxu0 %v1276
    %1319 = vmatpush.msra.mxu0 %v1272
    %1320 = vmatpush.msra.mxu0 %v1268
    %1321 = vmatpush.msra.mxu0 %v1264
    %1322 = vmatpush.msra.mxu0 %v1260
    %1323 = vmatpush.msra.mxu0 %v1256
    %1324 = vmatpush.msra.mxu0 %v1252
    %1325 = vmatpush.msra.mxu0 %v1248
    %1326 = vmatpush.msra.mxu0 %v1244
    %1327 = vmatpush.msra.mxu0 %v1240
    %1328 = vmatpush.msra.mxu0 %v1236
    %1329 = vmatpush.msra.mxu0 %v1232
    %1330 = vmatpush.msra.mxu0 %v1228
    %1331 = vmatpush.msra.mxu0 %v1224
    %1332 = vmatpush.msra.mxu0 %v1220
    %1333 = vmatpush.msra.mxu0 %v1216
    %1334 = vmatmul.f32.gmra.mxu0 %v1213
    %v1335 = vpop.f32.mrf.mxu0
    %v1336 = vadd.f32 0.0, %v1335
    %1337 = vdwg.mxu0
    %1338 = vmatpush.msra.mxu0 %v1277
    %1339 = vmatpush.msra.mxu0 %v1273
    %1340 = vmatpush.msra.mxu0 %v1269
    %1341 = vmatpush.msra.mxu0 %v1265
    %1342 = vmatpush.msra.mxu0 %v1261
    %1343 = vmatpush.msra.mxu0 %v1257
    %1344 = vmatpush.msra.mxu0 %v1253
    %1345 = vmatpush.msra.mxu0 %v1249
    %1346 = vmatpush.msra.mxu0 %v1245
    %1347 = vmatpush.msra.mxu0 %v1241
    %1348 = vmatpush.msra.mxu0 %v1237
    %1349 = vmatpush.msra.mxu0 %v1233
    %1350 = vmatpush.msra.mxu0 %v1229
    %1351 = vmatpush.msra.mxu0 %v1225
    %1352 = vmatpush.msra.mxu0 %v1221
    %1353 = vmatpush.msra.mxu0 %v1217
    %1354 = vmatmul.f32.gmra.mxu0 %v1213
    %v1355 = vpop.f32.mrf.mxu0
    %v1356 = vadd.f32 0.0, %v1355
    %1357 = vdwg.mxu0
    %v1358 = vadd.f32 %v1209, %v1296
    %v1359 = vadd.f32 %v1210, %v1316
    %v1360 = vadd.f32 %v1211, %v1336
    %v1361 = vadd.f32 %v1212, %v1356
    %v1362 = vmul.f32 %v1358, 0.5
    %v1363 = vtanh.pop %v1362
    %v1364 = vmul.f32 %v1363, 0.5
    %v1365 = vadd.f32 %v1364, 0.5
    %v1366 = vmul.f32 %v1359, 0.5
    %v1367 = vtanh.pop %v1366
    %v1368 = vmul.f32 %v1367, 0.5
    %v1369 = vadd.f32 %v1368, 0.5
    %v1370 = vtanh.pop %v1360
    %v1371 = vmul.f32 %v1361, 0.5
    %v1372 = vtanh.pop %v1371
    %v1373 = vmul.f32 %v1372, 0.5
    %v1374 = vadd.f32 %v1373, 0.5
    %v1375 = vld [vmem:[#allocation3] sm:$0xff]
    %v1376 = vmul.f32 %v1369, %v1375
    %v1377 = vmul.f32 %v1365, %v1370
    %v1378 = vadd.f32 %v1376, %v1377
    %1379 = vst [vmem:[#allocation3] sm:$0xff] %v1378
    %v1380 = vtanh.pop %v1378
    %v1381 = vmul.f32 %v1374, %v1380
    %1382 = vst [vmem:[#allocation2] sm:$0xff] %v1381
    %s1383 = smul.u32 6, 4
    %s1384 = smul.addr %s1383, 8
    %s1385 = scalar_lea.vmem [#allocation4], %s1384
    %v1386 = vld [vmem:[%s1385] sm:$0xff]
    %v1387 = vld [vmem:[%s1385 + $0x8] sm:$0xff]
    %v1388 = vld [vmem:[%s1385 + $0x10] sm:$0xff]
    %v1389 = vld [vmem:[%s1385 + $0x18] sm:$0xff]
    %v1390 = vld [vmem:[#allocation2] sm:$0xff]
    %v1391 = vld [vmem:[#allocation5] sm:$0xff]
    %v1392 = vld [vmem:[#allocation5 + $0x8] sm:$0xff]
    %v1393 = vld [vmem:[#allocation5 + $0x10] sm:$0xff]
    %v1394 = vld [vmem:[#allocation5 + $0x18] sm:$0xff]
    %v1395 = vld [vmem:[#allocation5 + $0x20] sm:$0xff]
    %v1396 = vld [vmem:[#allocation5 + $0x28] sm:$0xff]
    %v1397 = vld [vmem:[#allocation5 + $0x30] sm:$0xff]
    %v1398 = vld [vmem:[#allocation5 + $0x38] sm:$0xff]
    %v1399 = vld [vmem:[#allocation5 + $0x40] sm:$0xff]
    %v1400 = vld [vmem:[#allocation5 + $0x48] sm:$0xff]
    %v1401 = vld [vmem:[#allocation5 + $0x50] sm:$0xff]
    %v1402 = vld [vmem:[#allocation5 + $0x58] sm:$0xff]
    %v1403 = vld [vmem:[#allocation5 + $0x60] sm:$0xff]
    %v1404 = vld [vmem:[#allocation5 + $0x68] sm:$0xff]
    %v1405 = vld [vmem:[#allocation5 + $0x70] sm:$0xff]
    %v1406 = vld [vmem:[#allocation5 + $0x78] sm:$0xff]
    %v1407 = vld [vmem:[#allocation5 + $0x80] sm:$0xff]
    %v1408 = vld [vmem:[#allocation5 + $0x88] sm:$0xff]
    %v1409 = vld [vmem:[#allocation5 + $0x90] sm:$0xff]
    %v1410 = vld [vmem:[#allocation5 + $0x98] sm:$0xff]
    %v1411 = vld [vmem:[#allocation5 + $0xa0] sm:$0xff]
    %v1412 = vld [vmem:[#allocation5 + $0xa8] sm:$0xff]
    %v1413 = vld [vmem:[#allocation5 + $0xb0] sm:$0xff]
    %v1414 = vld [vmem:[#allocation5 + $0xb8] sm:$0xff]
    %v1415 = vld [vmem:[#allocation5 + $0xc0] sm:$0xff]
    %v1416 = vld [vmem:[#allocation5 + $0xc8] sm:$0xff]
    %v1417 = vld [vmem:[#allocation5 + $0xd0] sm:$0xff]
    %v1418 = vld [vmem:[#allocation5 + $0xd8] sm:$0xff]
    %v1419 = vld [vmem:[#allocation5 + $0xe0] sm:$0xff]
    %v1420 = vld [vmem:[#allocation5 + $0xe8] sm:$0xff]
    %v1421 = vld [vmem:[#allocation5 + $0xf0] sm:$0xff]
    %v1422 = vld [vmem:[#allocation5 + $0xf8] sm:$0xff]
    %v1423 = vld [vmem:[#allocation5 + $0x100] sm:$0xff]
    %v1424 = vld [vmem:[#allocation5 + $0x108] sm:$0xff]
    %v1425 = vld [vmem:[#allocation5 + $0x110] sm:$0xff]
    %v1426 = vld [vmem:[#allocation5 + $0x118] sm:$0xff]
    %v1427 = vld [vmem:[#allocation5 + $0x120] sm:$0xff]
    %v1428 = vld [vmem:[#allocation5 + $0x128] sm:$0xff]
    %v1429 = vld [vmem:[#allocation5 + $0x130] sm:$0xff]
    %v1430 = vld [vmem:[#allocation5 + $0x138] sm:$0xff]
    %v1431 = vld [vmem:[#allocation5 + $0x140] sm:$0xff]
    %v1432 = vld [vmem:[#allocation5 + $0x148] sm:$0xff]
    %v1433 = vld [vmem:[#allocation5 + $0x150] sm:$0xff]
    %v1434 = vld [vmem:[#allocation5 + $0x158] sm:$0xff]
    %v1435 = vld [vmem:[#allocation5 + $0x160] sm:$0xff]
    %v1436 = vld [vmem:[#allocation5 + $0x168] sm:$0xff]
    %v1437 = vld [vmem:[#allocation5 + $0x170] sm:$0xff]
    %v1438 = vld [vmem:[#allocation5 + $0x178] sm:$0xff]
    %v1439 = vld [vmem:[#allocation5 + $0x180] sm:$0xff]
    %v1440 = vld [vmem:[#allocation5 + $0x188] sm:$0xff]
    %v1441 = vld [vmem:[#allocation5 + $0x190] sm:$0xff]
    %v1442 = vld [vmem:[#allocation5 + $0x198] sm:$0xff]
    %v1443 = vld [vmem:[#allocation5 + $0x1a0] sm:$0xff]
    %v1444 = vld [vmem:[#allocation5 + $0x1a8] sm:$0xff]
    %v1445 = vld [vmem:[#allocation5 + $0x1b0] sm:$0xff]
    %v1446 = vld [vmem:[#allocation5 + $0x1b8] sm:$0xff]
    %v1447 = vld [vmem:[#allocation5 + $0x1c0] sm:$0xff]
    %v1448 = vld [vmem:[#allocation5 + $0x1c8] sm:$0xff]
    %v1449 = vld [vmem:[#allocation5 + $0x1d0] sm:$0xff]
    %v1450 = vld [vmem:[#allocation5 + $0x1d8] sm:$0xff]
    %v1451 = vld [vmem:[#allocation5 + $0x1e0] sm:$0xff]
    %v1452 = vld [vmem:[#allocation5 + $0x1e8] sm:$0xff]
    %v1453 = vld [vmem:[#allocation5 + $0x1f0] sm:$0xff]
    %v1454 = vld [vmem:[#allocation5 + $0x1f8] sm:$0xff]
    %1455 = vmatpush.msra.mxu0 %v1451
    %1456 = vmatpush.msra.mxu0 %v1447
    %1457 = vmatpush.msra.mxu0 %v1443
    %1458 = vmatpush.msra.mxu0 %v1439
    %1459 = vmatpush.msra.mxu0 %v1435
    %1460 = vmatpush.msra.mxu0 %v1431
    %1461 = vmatpush.msra.mxu0 %v1427
    %1462 = vmatpush.msra.mxu0 %v1423
    %1463 = vmatpush.msra.mxu0 %v1419
    %1464 = vmatpush.msra.mxu0 %v1415
    %1465 = vmatpush.msra.mxu0 %v1411
    %1466 = vmatpush.msra.mxu0 %v1407
    %1467 = vmatpush.msra.mxu0 %v1403
    %1468 = vmatpush.msra.mxu0 %v1399
    %1469 = vmatpush.msra.mxu0 %v1395
    %1470 = vmatpush.msra.mxu0 %v1391
    %1471 = vmatmul.f32.gmra.mxu0 %v1390
    %v1472 = vpop.f32.mrf.mxu0
    %v1473 = vadd.f32 0.0, %v1472
    %1474 = vdwg.mxu0
    %1475 = vmatpush.msra.mxu0 %v1452
    %1476 = vmatpush.msra.mxu0 %v1448
    %1477 = vmatpush.msra.mxu0 %v1444
    %1478 = vmatpush.msra.mxu0 %v1440
    %1479 = vmatpush.msra.mxu0 %v1436
    %1480 = vmatpush.msra.mxu0 %v1432
    %1481 = vmatpush.msra.mxu0 %v1428
    %1482 = vmatpush.msra.mxu0 %v1424
    %1483 = vmatpush.msra.mxu0 %v1420
    %1484 = vmatpush.msra.mxu0 %v1416
    %1485 = vmatpush.msra.mxu0 %v1412
    %1486 = vmatpush.msra.mxu0 %v1408
    %1487 = vmatpush.msra.mxu0 %v1404
    %1488 = vmatpush.msra.mxu0 %v1400
    %1489 = vmatpush.msra.mxu0 %v1396
    %1490 = vmatpush.msra.mxu0 %v1392
    %1491 = vmatmul.f32.gmra.mxu0 %v1390
    %v1492 = vpop.f32.mrf.mxu0
    %v1493 = vadd.f32 0.0, %v1492
    %1494 = vdwg.mxu0
    %1495 = vmatpush.msra.mxu0 %v1453
    %1496 = vmatpush.msra.mxu0 %v1449
    %1497 = vmatpush.msra.mxu0 %v1445
    %1498 = vmatpush.msra.mxu0 %v1441
    %1499 = vmatpush.msra.mxu0 %v1437
    %1500 = vmatpush.msra.mxu0 %v1433
    %1501 = vmatpush.msra.mxu0 %v1429
    %1502 = vmatpush.msra.mxu0 %v1425
    %1503 = vmatpush.msra.mxu0 %v1421
    %1504 = vmatpush.msra.mxu0 %v1417
    %1505 = vmatpush.msra.mxu0 %v1413
    %1506 = vmatpush.msra.mxu0 %v1409
    %1507 = vmatpush.msra.mxu0 %v1405
    %1508 = vmatpush.msra.mxu0 %v1401
    %1509 = vmatpush.msra.mxu0 %v1397
    %1510 = vmatpush.msra.mxu0 %v1393
    %1511 = vmatmul.f32.gmra.mxu0 %v1390
    %v1512 = vpop.f32.mrf.mxu0
    %v1513 = vadd.f32 0.0, %v1512
    %1514 = vdwg.mxu0
    %1515 = vmatpush.msra.mxu0 %v1454
    %1516 = vmatpush.msra.mxu0 %v1450
    %1517 = vmatpush.msra.mxu0 %v1446
    %1518 = vmatpush.msra.mxu0 %v1442
    %1519 = vmatpush.msra.mxu0 %v1438
    %1520 = vmatpush.msra.mxu0 %v1434
    %1521 = vmatpush.msra.mxu0 %v1430
    %1522 = vmatpush.msra.mxu0 %v1426
    %1523 = vmatpush.msra.mxu0 %v1422
    %1524 = vmatpush.msra.mxu0 %v1418
    %1525 = vmatpush.msra.mxu0 %v1414
    %1526 = vmatpush.msra.mxu0 %v1410
    %1527 = vmatpush.msra.mxu0 %v1406
    %1528 = vmatpush.msra.mxu0 %v1402
    %1529 = vmatpush.msra.mxu0 %v1398
    %1530 = vmatpush.msra.mxu0 %v1394
    %1531 = vmatmul.f32.gmra.mxu0 %v1390
    %v1532 = vpop.f32.mrf.mxu0
    %v1533 = vadd.f32 0.0, %v1532
    %1534 = vdwg.mxu0
    %v1535 = vadd.f32 %v1386, %v1473
    %v1536 = vadd.f32 %v1387, %v1493
    %v1537 = vadd.f32 %v1388, %v1513
    %v1538 = vadd.f32 %v1389, %v1533
    %v1539 = vmul.f32 %v1535, 0.5
    %v1540 = vtanh.pop %v1539
    %v1541 = vmul.f32 %v1540, 0.5
    %v1542 = vadd.f32 %v1541, 0.5
    %v1543 = vmul.f32 %v1536, 0.5
    %v1544 = vtanh.pop %v1543
    %v1545 = vmul.f32 %v1544, 0.5
    %v1546 = vadd.f32 %v1545, 0.5
    %v1547 = vtanh.pop %v1537
    %v1548 = vmul.f32 %v1538, 0.5
    %v1549 = vtanh.pop %v1548
    %v1550 = vmul.f32 %v1549, 0.5
    %v1551 = vadd.f32 %v1550, 0.5
    %v1552 = vld [vmem:[#allocation3] sm:$0xff]
    %v1553 = vmul.f32 %v1546, %v1552
    %v1554 = vmul.f32 %v1542, %v1547
    %v1555 = vadd.f32 %v1553, %v1554
    %1556 = vst [vmem:[#allocation3] sm:$0xff] %v1555
    %v1557 = vtanh.pop %v1555
    %v1558 = vmul.f32 %v1551, %v1557
    %1559 = vst [vmem:[#allocation2] sm:$0xff] %v1558
    %s1560 = smul.u32 7, 4
    %s1561 = smul.addr %s1560, 8
    %s1562 = scalar_lea.vmem [#allocation4], %s1561
    %v1563 = vld [vmem:[%s1562] sm:$0xff]
    %v1564 = vld [vmem:[%s1562 + $0x8] sm:$0xff]
    %v1565 = vld [vmem:[%s1562 + $0x10] sm:$0xff]
    %v1566 = vld [vmem:[%s1562 + $0x18] sm:$0xff]
    %v1567 = vld [vmem:[#allocation2] sm:$0xff]
    %v1568 = vld [vmem:[#allocation5] sm:$0xff]
    %v1569 = vld [vmem:[#allocation5 + $0x8] sm:$0xff]
    %v1570 = vld [vmem:[#allocation5 + $0x10] sm:$0xff]
    %v1571 = vld [vmem:[#allocation5 + $0x18] sm:$0xff]
    %v1572 = vld [vmem:[#allocation5 + $0x20] sm:$0xff]
    %v1573 = vld [vmem:[#allocation5 + $0x28] sm:$0xff]
    %v1574 = vld [vmem:[#allocation5 + $0x30] sm:$0xff]
    %v1575 = vld [vmem:[#allocation5 + $0x38] sm:$0xff]
    %v1576 = vld [vmem:[#allocation5 + $0x40] sm:$0xff]
    %v1577 = vld [vmem:[#allocation5 + $0x48] sm:$0xff]
    %v1578 = vld [vmem:[#allocation5 + $0x50] sm:$0xff]
    %v1579 = vld [vmem:[#allocation5 + $0x58] sm:$0xff]
    %v1580 = vld [vmem:[#allocation5 + $0x60] sm:$0xff]
    %v1581 = vld [vmem:[#allocation5 + $0x68] sm:$0xff]
    %v1582 = vld [vmem:[#allocation5 + $0x70] sm:$0xff]
    %v1583 = vld [vmem:[#allocation5 + $0x78] sm:$0xff]
    %v1584 = vld [vmem:[#allocation5 + $0x80] sm:$0xff]
    %v1585 = vld [vmem:[#allocation5 + $0x88] sm:$0xff]
    %v1586 = vld [vmem:[#allocation5 + $0x90] sm:$0xff]
    %v1587 = vld [vmem:[#allocation5 + $0x98] sm:$0xff]
    %v1588 = vld [vmem:[#allocation5 + $0xa0] sm:$0xff]
    %v1589 = vld [vmem:[#allocation5 + $0xa8] sm:$0xff]
    %v1590 = vld [vmem:[#allocation5 + $0xb0] sm:$0xff]
    %v1591 = vld [vmem:[#allocation5 + $0xb8] sm:$0xff]
    %v1592 = vld [vmem:[#allocation5 + $0xc0] sm:$0xff]
    %v1593 = vld [vmem:[#allocation5 + $0xc8] sm:$0xff]
    %v1594 = vld [vmem:[#allocation5 + $0xd0] sm:$0xff]
    %v1595 = vld [vmem:[#allocation5 + $0xd8] sm:$0xff]
    %v1596 = vld [vmem:[#allocation5 + $0xe0] sm:$0xff]
    %v1597 = vld [vmem:[#allocation5 + $0xe8] sm:$0xff]
    %v1598 = vld [vmem:[#allocation5 + $0xf0] sm:$0xff]
    %v1599 = vld [vmem:[#allocation5 + $0xf8] sm:$0xff]
    %v1600 = vld [vmem:[#allocation5 + $0x100] sm:$0xff]
    %v1601 = vld [vmem:[#allocation5 + $0x108] sm:$0xff]
    %v1602 = vld [vmem:[#allocation5 + $0x110] sm:$0xff]
    %v1603 = vld [vmem:[#allocation5 + $0x118] sm:$0xff]
    %v1604 = vld [vmem:[#allocation5 + $0x120] sm:$0xff]
    %v1605 = vld [vmem:[#allocation5 + $0x128] sm:$0xff]
    %v1606 = vld [vmem:[#allocation5 + $0x130] sm:$0xff]
    %v1607 = vld [vmem:[#allocation5 + $0x138] sm:$0xff]
    %v1608 = vld [vmem:[#allocation5 + $0x140] sm:$0xff]
    %v1609 = vld [vmem:[#allocation5 + $0x148] sm:$0xff]
    %v1610 = vld [vmem:[#allocation5 + $0x150] sm:$0xff]
    %v1611 = vld [vmem:[#allocation5 + $0x158] sm:$0xff]
    %v1612 = vld [vmem:[#allocation5 + $0x160] sm:$0xff]
    %v1613 = vld [vmem:[#allocation5 + $0x168] sm:$0xff]
    %v1614 = vld [vmem:[#allocation5 + $0x170] sm:$0xff]
    %v1615 = vld [vmem:[#allocation5 + $0x178] sm:$0xff]
    %v1616 = vld [vmem:[#allocation5 + $0x180] sm:$0xff]
    %v1617 = vld [vmem:[#allocation5 + $0x188] sm:$0xff]
    %v1618 = vld [vmem:[#allocation5 + $0x190] sm:$0xff]
    %v1619 = vld [vmem:[#allocation5 + $0x198] sm:$0xff]
    %v1620 = vld [vmem:[#allocation5 + $0x1a0] sm:$0xff]
    %v1621 = vld [vmem:[#allocation5 + $0x1a8] sm:$0xff]
    %v1622 = vld [vmem:[#allocation5 + $0x1b0] sm:$0xff]
    %v1623 = vld [vmem:[#allocation5 + $0x1b8] sm:$0xff]
    %v1624 = vld [vmem:[#allocation5 + $0x1c0] sm:$0xff]
    %v1625 = vld [vmem:[#allocation5 + $0x1c8] sm:$0xff]
    %v1626 = vld [vmem:[#allocation5 + $0x1d0] sm:$0xff]
    %v1627 = vld [vmem:[#allocation5 + $0x1d8] sm:$0xff]
    %v1628 = vld [vmem:[#allocation5 + $0x1e0] sm:$0xff]
    %v1629 = vld [vmem:[#allocation5 + $0x1e8] sm:$0xff]
    %v1630 = vld [vmem:[#allocation5 + $0x1f0] sm:$0xff]
    %v1631 = vld [vmem:[#allocation5 + $0x1f8] sm:$0xff]
    %1632 = vmatpush.msra.mxu0 %v1628
    %1633 = vmatpush.msra.mxu0 %v1624
    %1634 = vmatpush.msra.mxu0 %v1620
    %1635 = vmatpush.msra.mxu0 %v1616
    %1636 = vmatpush.msra.mxu0 %v1612
    %1637 = vmatpush.msra.mxu0 %v1608
    %1638 = vmatpush.msra.mxu0 %v1604
    %1639 = vmatpush.msra.mxu0 %v1600
    %1640 = vmatpush.msra.mxu0 %v1596
    %1641 = vmatpush.msra.mxu0 %v1592
    %1642 = vmatpush.msra.mxu0 %v1588
    %1643 = vmatpush.msra.mxu0 %v1584
    %1644 = vmatpush.msra.mxu0 %v1580
    %1645 = vmatpush.msra.mxu0 %v1576
    %1646 = vmatpush.msra.mxu0 %v1572
    %1647 = vmatpush.msra.mxu0 %v1568
    %1648 = vmatmul.f32.gmra.mxu0 %v1567
    %v1649 = vpop.f32.mrf.mxu0
    %v1650 = vadd.f32 0.0, %v1649
    %1651 = vdwg.mxu0
    %1652 = vmatpush.msra.mxu0 %v1629
    %1653 = vmatpush.msra.mxu0 %v1625
    %1654 = vmatpush.msra.mxu0 %v1621
    %1655 = vmatpush.msra.mxu0 %v1617
    %1656 = vmatpush.msra.mxu0 %v1613
    %1657 = vmatpush.msra.mxu0 %v1609
    %1658 = vmatpush.msra.mxu0 %v1605
    %1659 = vmatpush.msra.mxu0 %v1601
    %1660 = vmatpush.msra.mxu0 %v1597
    %1661 = vmatpush.msra.mxu0 %v1593
    %1662 = vmatpush.msra.mxu0 %v1589
    %1663 = vmatpush.msra.mxu0 %v1585
    %1664 = vmatpush.msra.mxu0 %v1581
    %1665 = vmatpush.msra.mxu0 %v1577
    %1666 = vmatpush.msra.mxu0 %v1573
    %1667 = vmatpush.msra.mxu0 %v1569
    %1668 = vmatmul.f32.gmra.mxu0 %v1567
    %v1669 = vpop.f32.mrf.mxu0
    %v1670 = vadd.f32 0.0, %v1669
    %1671 = vdwg.mxu0
    %1672 = vmatpush.msra.mxu0 %v1630
    %1673 = vmatpush.msra.mxu0 %v1626
    %1674 = vmatpush.msra.mxu0 %v1622
    %1675 = vmatpush.msra.mxu0 %v1618
    %1676 = vmatpush.msra.mxu0 %v1614
    %1677 = vmatpush.msra.mxu0 %v1610
    %1678 = vmatpush.msra.mxu0 %v1606
    %1679 = vmatpush.msra.mxu0 %v1602
    %1680 = vmatpush.msra.mxu0 %v1598
    %1681 = vmatpush.msra.mxu0 %v1594
    %1682 = vmatpush.msra.mxu0 %v1590
    %1683 = vmatpush.msra.mxu0 %v1586
    %1684 = vmatpush.msra.mxu0 %v1582
    %1685 = vmatpush.msra.mxu0 %v1578
    %1686 = vmatpush.msra.mxu0 %v1574
    %1687 = vmatpush.msra.mxu0 %v1570
    %1688 = vmatmul.f32.gmra.mxu0 %v1567
    %v1689 = vpop.f32.mrf.mxu0
    %v1690 = vadd.f32 0.0, %v1689
    %1691 = vdwg.mxu0
    %1692 = vmatpush.msra.mxu0 %v1631
    %1693 = vmatpush.msra.mxu0 %v1627
    %1694 = vmatpush.msra.mxu0 %v1623
    %1695 = vmatpush.msra.mxu0 %v1619
    %1696 = vmatpush.msra.mxu0 %v1615
    %1697 = vmatpush.msra.mxu0 %v1611
    %1698 = vmatpush.msra.mxu0 %v1607
    %1699 = vmatpush.msra.mxu0 %v1603
    %1700 = vmatpush.msra.mxu0 %v1599
    %1701 = vmatpush.msra.mxu0 %v1595
    %1702 = vmatpush.msra.mxu0 %v1591
    %1703 = vmatpush.msra.mxu0 %v1587
    %1704 = vmatpush.msra.mxu0 %v1583
    %1705 = vmatpush.msra.mxu0 %v1579
    %1706 = vmatpush.msra.mxu0 %v1575
    %1707 = vmatpush.msra.mxu0 %v1571
    %1708 = vmatmul.f32.gmra.mxu0 %v1567
    %v1709 = vpop.f32.mrf.mxu0
    %v1710 = vadd.f32 0.0, %v1709
    %1711 = vdwg.mxu0
    %v1712 = vadd.f32 %v1563, %v1650
    %v1713 = vadd.f32 %v1564, %v1670
    %v1714 = vadd.f32 %v1565, %v1690
    %v1715 = vadd.f32 %v1566, %v1710
    %v1716 = vmul.f32 %v1712, 0.5
    %v1717 = vtanh.pop %v1716
    %v1718 = vmul.f32 %v1717, 0.5
    %v1719 = vadd.f32 %v1718, 0.5
    %v1720 = vmul.f32 %v1713, 0.5
    %v1721 = vtanh.pop %v1720
    %v1722 = vmul.f32 %v1721, 0.5
    %v1723 = vadd.f32 %v1722, 0.5
    %v1724 = vtanh.pop %v1714
    %v1725 = vmul.f32 %v1715, 0.5
    %v1726 = vtanh.pop %v1725
    %v1727 = vmul.f32 %v1726, 0.5
    %v1728 = vadd.f32 %v1727, 0.5
    %v1729 = vld [vmem:[#allocation3] sm:$0xff]
    %v1730 = vmul.f32 %v1723, %v1729
    %v1731 = vmul.f32 %v1719, %v1724
    %v1732 = vadd.f32 %v1730, %v1731
    %1733 = vst [vmem:[#allocation3] sm:$0xff] %v1732
    %v1734 = vtanh.pop %v1732
    %v1735 = vmul.f32 %v1728, %v1734
    %1736 = vst [vmem:[#allocation2] sm:$0xff] %v1735
    %v1737 = vld [vmem:[#allocation2] sm:$0xff]
    %v1738 = vld [vmem:[#allocation8] sm:$0xff]
    %v1739 = vld [vmem:[#allocation8 + $0x8] sm:$0xff]
    %v1740 = vld [vmem:[#allocation8 + $0x10] sm:$0xff]
    %v1741 = vld [vmem:[#allocation8 + $0x18] sm:$0xff]
    %v1742 = vld [vmem:[#allocation8 + $0x20] sm:$0xff]
    %v1743 = vld [vmem:[#allocation8 + $0x28] sm:$0xff]
    %v1744 = vld [vmem:[#allocation8 + $0x30] sm:$0xff]
    %v1745 = vld [vmem:[#allocation8 + $0x38] sm:$0xff]
    %v1746 = vld [vmem:[#allocation8 + $0x40] sm:$0xff]
    %v1747 = vld [vmem:[#allocation8 + $0x48] sm:$0xff]
    %v1748 = vld [vmem:[#allocation8 + $0x50] sm:$0xff]
    %v1749 = vld [vmem:[#allocation8 + $0x58] sm:$0xff]
    %v1750 = vld [vmem:[#allocation8 + $0x60] sm:$0xff]
    %v1751 = vld [vmem:[#allocation8 + $0x68] sm:$0xff]
    %v1752 = vld [vmem:[#allocation8 + $0x70] sm:$0xff]
    %v1753 = vld [vmem:[#allocation8 + $0x78] sm:$0xff]
    %v1754 = vld [vmem:[%s5] sm:$0x1]
    %v1756 = vperm.slane %v1754, 0
    %1758 = vmatpush.msra.mxu0 %v1753
    %1759 = vmatpush.msra.mxu0 %v1752
    %1760 = vmatpush.msra.mxu0 %v1751
    %1761 = vmatpush.msra.mxu0 %v1750
    %1762 = vmatpush.msra.mxu0 %v1749
    %1763 = vmatpush.msra.mxu0 %v1748
    %1764 = vmatpush.msra.mxu0 %v1747
    %1765 = vmatpush.msra.mxu0 %v1746
    %1766 = vmatpush.msra.mxu0 %v1745
    %1767 = vmatpush.msra.mxu0 %v1744
    %1768 = vmatpush.msra.mxu0 %v1743
    %1769 = vmatpush.msra.mxu0 %v1742
    %1770 = vmatpush.msra.mxu0 %v1741
    %1771 = vmatpush.msra.mxu0 %v1740
    %1772 = vmatpush.msra.mxu0 %v1739
    %1773 = vmatpush.msra.mxu0 %v1738
    %1774 = vmatmul.f32.gmra.mxu0 %v1737
    %v1775 = vpop.f32.mrf.mxu0
    %v1776 = vadd.f32 %v1756, %v1775
    %1777 = vdwg.mxu0
    %1778 = vst [vmem:[#allocation10] sm:$0xff] %v1776
    // Predicated region
    $region38: #{tpu_custom_call.1} parent=1 // pred_check
      _
    $region39: #{tpu_custom_call.1} parent=1 // pred_check_branch
      %1780 = sbr.rel (0) target = $region41
    $region40: #{tpu_custom_call.1} parent=1 // pred_region
      %1782 = vsyncadd [#allocation7], 0
      %s1784 = sshll.u32 [#allocation10], 4
      %s1785 = int_to_ptr.vmem [resolvable:$true] %s1784
      %s1786 = sshll.u32 %s6, 4
      %s1787 = int_to_ptr.hbm [resolvable:$true] %s1786
      %1789 = dma.vmem_to_hbm [thread:$0]  %s1785, 128, %s1787, [#allocation7]
    $region41: #{tpu_custom_call.1} parent=1 // pred_fallthru
      _
    // Predicated region
    $region42: #{tpu_custom_call.1} parent=1 // pred_check
      _
    $region43: #{tpu_custom_call.1} parent=1 // pred_check_branch
      %1791 = sbr.rel (0) target = $region45
    $region44: #{tpu_custom_call.1} parent=1 // pred_region
      %1793 = dma.done [#allocation7], 128
    $region45: #{tpu_custom_call.1} parent=1 // pred_fallthru
      _
    %1794 = vsyncpa [#allocation6], 1
    %1795 = vsyncpa [#allocation9], 1
    %1796 = vsyncpa [#allocation7], 1

</llo_original>
